<compile_context>
chip_gen: v7x
topology: tpu7x:2x2x1
jax: 0.10.0
libtpu: 0.0.40
codegen_flags: <defaults>
</compile_context>

<pallas_src>
import jax
import jax.numpy as jnp
from jax.experimental import pallas as pl
from jax.experimental.pallas import tpu as pltpu

# ----------------------------- synthetic Config -----------------------------
VOCAB       = 50
WORD_DIM    = 32
POS_DIM     = 8
POS_VOCAB   = 20
SEQ_LEN     = 16
IN_DIM      = WORD_DIM + 2 * POS_DIM        # 48
HIDDEN      = 64
NUM_CLASSES = 12
KERNEL_SIZE = 3
BAG_SIZE    = 2                             # fixed-size bags (synthetic scope)
NUM_BAGS    = 4
BATCH       = NUM_BAGS * BAG_SIZE           # 8 sentence instances


# --------------------- fused encoder + selector + loss ----------------------
def _fused_kernel(taps_ref, w_ref, b_ref, rel_ref, bias_ref, q1h_ref,
                  lab1h_ref, loss_ref):
    # taps_ref : (K, B*L, D)  bf16   pre-shifted conv taps (aligned slabs)
    # w_ref    : (K, D, H)    bf16   conv weight
    # b_ref    : (1, H)       f32    conv bias
    # rel_ref  : (C, H)       bf16   relation matrix
    # bias_ref : (1, C)       f32    relation bias
    # q1h_ref  : (B, C)       bf16   per-instance query relation one-hot
    # lab1h_ref: (NB, C)      f32    per-bag label one-hot
    # loss_ref : (1, 1)       f32    scalar loss

    # ---- CNN encoder: conv1d as K batched tap matmuls on the MXU ----
    acc = jnp.zeros((BATCH * SEQ_LEN, HIDDEN), jnp.float32)
    for k in range(KERNEL_SIZE):                       # static unroll, K = 3
        acc = acc + jnp.dot(taps_ref[k], w_ref[k],
                            preferred_element_type=jnp.float32)
    acc = acc + b_ref[...]                             # one (1,H) broadcast
    acc = acc.reshape(BATCH, SEQ_LEN, HIDDEN)
    text = jnp.maximum(jnp.max(acc, axis=1), 0.0)      # max-pool + relu, (B,H) f32

    # ---- Selector: selective attention within each bag ----
    rel = rel_ref[...]                                              # (C,H) bf16
    rel_q = jnp.dot(q1h_ref[...], rel,
                    preferred_element_type=jnp.float32)             # (B,H) f32
    att_score = jnp.sum(text * rel_q, axis=-1)                      # (B,)
    att_score = att_score.reshape(NUM_BAGS, BAG_SIZE)

    m_att = jnp.max(att_score, axis=-1, keepdims=True)
    e_att = jnp.exp(att_score - m_att)
    att = e_att / jnp.sum(e_att, axis=-1, keepdims=True)            # (NB, BS)

    text_b = text.reshape(NUM_BAGS, BAG_SIZE, HIDDEN)
    bag = jnp.sum(att[:, :, None] * text_b, axis=1)                 # (NB, H) f32

    logits = jax.lax.dot_general(
        bag.astype(jnp.bfloat16), rel, (((1,), (1,)), ((), ())),
        preferred_element_type=jnp.float32) + bias_ref[...]         # (NB, C)

    # ---- mean cross-entropy over bags ----
    m = jnp.max(logits, axis=-1, keepdims=True)
    lse = m + jnp.log(jnp.sum(jnp.exp(logits - m), axis=-1, keepdims=True))
    logp = logits - lse
    nll = -jnp.sum(lab1h_ref[...] * logp, axis=-1, keepdims=True)   # (NB, 1)
    loss_ref[...] = jnp.sum(nll, axis=0, keepdims=True) / NUM_BAGS  # (1, 1)


def fused_forward(taps, conv_w, conv_b, rel_mat, rel_bias, q1h, lab1h):
    return pl.pallas_call(
        _fused_kernel,
        out_shape=jax.ShapeDtypeStruct((1, 1), jnp.float32),
        grid_spec=pltpu.PrefetchScalarGridSpec(
            num_scalar_prefetch=0,
            grid=(1,),
            in_specs=[
                pl.BlockSpec((KERNEL_SIZE, BATCH * SEQ_LEN, IN_DIM),
                             lambda i: (0, 0, 0)),
                pl.BlockSpec((KERNEL_SIZE, IN_DIM, HIDDEN), lambda i: (0, 0, 0)),
                pl.BlockSpec((1, HIDDEN), lambda i: (0, 0)),
                pl.BlockSpec((NUM_CLASSES, HIDDEN), lambda i: (0, 0)),
                pl.BlockSpec((1, NUM_CLASSES), lambda i: (0, 0)),
                pl.BlockSpec((BATCH, NUM_CLASSES), lambda i: (0, 0)),
                pl.BlockSpec((NUM_BAGS, NUM_CLASSES), lambda i: (0, 0)),
            ],
            out_specs=pl.BlockSpec((1, 1), lambda i: (0, 0)),
        ),
        compiler_params=pltpu.CompilerParams(
            dimension_semantics=("arbitrary",)),
    )(taps, conv_w, conv_b, rel_mat, rel_bias, q1h, lab1h)


# ------------------------------ full forward ---------------------------------
def latent_re_forward(params, word, pos1, pos2, label, query):
    # glue: embedding lookups + concat + zero-padding (conv padding=1)
    w_emb = params["word_vec"][word]                          # (B, L, WORD_DIM)
    p1_emb = params["pos1_emb"][pos1]                         # (B, L, POS_DIM)
    p2_emb = params["pos2_emb"][pos2]                         # (B, L, POS_DIM)
    x = jnp.concatenate([w_emb, p1_emb, p2_emb], axis=-1)     # (B, L, D)
    x_pad = jnp.pad(x, ((0, 0), (1, 1), (0, 0)))              # (B, L+2, D)

    # pre-shifted, sublane-aligned conv taps: (K, B*L, D)
    taps = jnp.stack(
        [x_pad[:, k:k + SEQ_LEN, :].reshape(BATCH * SEQ_LEN, IN_DIM)
         for k in range(KERNEL_SIZE)], axis=0).astype(jnp.bfloat16)

    q1h = jax.nn.one_hot(query, NUM_CLASSES, dtype=jnp.bfloat16)   # (B, C)
    lab1h = jax.nn.one_hot(label, NUM_CLASSES, dtype=jnp.float32)  # (NB, C)

    loss = fused_forward(taps,
                         params["conv_w"].astype(jnp.bfloat16),
                         params["conv_b"],
                         params["rel_mat"].astype(jnp.bfloat16),
                         params["rel_bias"],
                         q1h, lab1h)
    return loss[0, 0]


# ------------------------------ pure-JAX reference ---------------------------
def reference_forward(params, word, pos1, pos2, label, query, use_bf16):
    # Same math in plain JAX; with use_bf16=True it applies the identical bf16
    # operand casts the kernel uses (f32 accumulation), for a tight comparison.
    cast = (lambda a: a.astype(jnp.bfloat16)) if use_bf16 else (lambda a: a)

    w_emb = params["word_vec"][word]
    p1_emb = params["pos1_emb"][pos1]
    p2_emb = params["pos2_emb"][pos2]
    x = jnp.concatenate([w_emb, p1_emb, p2_emb], axis=-1)
    x_pad = jnp.pad(x, ((0, 0), (1, 1), (0, 0)))

    acc = jnp.zeros((BATCH, SEQ_LEN, HIDDEN), jnp.float32)
    for k in range(KERNEL_SIZE):
        acc = acc + jnp.einsum("bld,dh->blh",
                               cast(x_pad[:, k:k + SEQ_LEN, :]),
                               cast(params["conv_w"][k]),
                               preferred_element_type=jnp.float32)
    acc = acc + params["conv_b"][None, :, :]
    text = jnp.maximum(jnp.max(acc, axis=1), 0.0)             # (B, H)

    rel = cast(params["rel_mat"])
    q1h = jax.nn.one_hot(query, NUM_CLASSES, dtype=rel.dtype)
    rel_q = jnp.dot(q1h, rel, preferred_element_type=jnp.float32)
    att_score = jnp.sum(text * rel_q, axis=-1).reshape(NUM_BAGS, BAG_SIZE)
    att = jax.nn.softmax(att_score, axis=-1)
    bag = jnp.sum(att[:, :, None] * text.reshape(NUM_BAGS, BAG_SIZE, HIDDEN),
                  axis=1)
    logits = jnp.dot(cast(bag), rel.T,
                     preferred_element_type=jnp.float32) + params["rel_bias"][0]
    logp = jax.nn.log_softmax(logits, axis=-1)
    return -jnp.mean(logp[jnp.arange(NUM_BAGS), label])


# TODO(synk): the BERT / PCNN encoder paths of LatentRE and the eval
# (Config.training=False) / bag_type='one' branches are not implemented; only
# the cnn-encoder / att-selector training branch is.

# ------------------------------------ main -----------------------------------
if __name__ == "__main__":
    key = jax.random.PRNGKey(0)
    ks = jax.random.split(key, 10)
    params = {
        "word_vec": 0.1 * jax.random.normal(ks[0], (VOCAB, WORD_DIM), jnp.float32),
        "pos1_emb": 0.1 * jax.random.normal(ks[1], (POS_VOCAB, POS_DIM), jnp.float32),
        "pos2_emb": 0.1 * jax.random.normal(ks[2], (POS_VOCAB, POS_DIM), jnp.float32),
        "conv_w":  0.05 * jax.random.normal(ks[3], (KERNEL_SIZE, IN_DIM, HIDDEN), jnp.float32),
        "conv_b":  0.01 * jax.random.normal(ks[4], (1, HIDDEN), jnp.float32),
        "rel_mat": 0.1 * jax.random.normal(ks[5], (NUM_CLASSES, HIDDEN), jnp.float32),
        "rel_bias": 0.01 * jax.random.normal(ks[6], (1, NUM_CLASSES), jnp.float32),
    }
    word = jax.random.randint(ks[7], (BATCH, SEQ_LEN), 0, VOCAB)
    pos1 = jax.random.randint(ks[8], (BATCH, SEQ_LEN), 0, POS_VOCAB)
    pos2 = jax.random.randint(ks[9], (BATCH, SEQ_LEN), 0, POS_VOCAB)
    label = jax.random.randint(jax.random.PRNGKey(1), (NUM_BAGS,), 0, NUM_CLASSES)
    query = jnp.repeat(label, BAG_SIZE)                       # per-instance query

    loss = latent_re_forward(params, word, pos1, pos2, label, query)
    loss = jax.block_until_ready(loss)

    # tight check vs a reference using identical bf16-operand numerics
    ref_bf16 = reference_forward(params, word, pos1, pos2, label, query, True)
    assert jnp.allclose(loss, ref_bf16, atol=2e-4, rtol=2e-4), \
        (float(loss), float(ref_bf16))
    # loose check vs the full-f32 reference (bf16 operand rounding only)
    ref_f32 = reference_forward(params, word, pos1, pos2, label, query, False)
    assert jnp.allclose(loss, ref_f32, atol=3e-2, rtol=3e-2), \
        (float(loss), float(ref_f32))

    print("KERNEL_OK")
</pallas_src>

<mosaic_0001>
module attributes {stable_mosaic.version = 11 : i64} {
  func.func @_fused_kernel(%arg0: i32, %arg1: memref<3x128x48xbf16, #tpu.memory_space<vmem>>, %arg2: memref<3x48x64xbf16, #tpu.memory_space<vmem>>, %arg3: memref<1x64xf32, #tpu.memory_space<vmem>>, %arg4: memref<12x64xbf16, #tpu.memory_space<vmem>>, %arg5: memref<1x12xf32, #tpu.memory_space<vmem>>, %arg6: memref<8x12xbf16, #tpu.memory_space<vmem>>, %arg7: memref<4x12xf32, #tpu.memory_space<vmem>>, %arg8: memref<1x1xf32, #tpu.memory_space<vmem>>) attributes {dimension_semantics = [#tpu.dimension_semantics<arbitrary>], iteration_bounds = array<i64: 1>, scalar_prefetch = 0 : i64, scratch_operands = 0 : i64, tpu.core_type = #tpu.core_type<tc>, window_params = [{pipeline_mode = #tpu.pipeline_mode<synchronous>, transform_indices = @transform_0, window_bounds = array<i64: 3, 128, 48>}, {pipeline_mode = #tpu.pipeline_mode<synchronous>, transform_indices = @transform_1, window_bounds = array<i64: 3, 48, 64>}, {pipeline_mode = #tpu.pipeline_mode<synchronous>, transform_indices = @transform_2, window_bounds = array<i64: 1, 64>}, {pipeline_mode = #tpu.pipeline_mode<synchronous>, transform_indices = @transform_3, window_bounds = array<i64: 12, 64>}, {pipeline_mode = #tpu.pipeline_mode<synchronous>, transform_indices = @transform_4, window_bounds = array<i64: 1, 12>}, {pipeline_mode = #tpu.pipeline_mode<synchronous>, transform_indices = @transform_5, window_bounds = array<i64: 8, 12>}, {pipeline_mode = #tpu.pipeline_mode<synchronous>, transform_indices = @transform_6, window_bounds = array<i64: 4, 12>}, {pipeline_mode = #tpu.pipeline_mode<synchronous>, transform_indices = @transform_7, window_bounds = array<i64: 1, 1>}]} {
    %cst = arith.constant 0.000000e+00 : f32
    %0 = vector.broadcast %cst : f32 to vector<128x64xf32>
    %c0 = arith.constant 0 : index
    %c0_0 = arith.constant 0 : index
    %c0_1 = arith.constant 0 : index
    %1 = vector.load %arg1[%c0, %c0_0, %c0_1] : memref<3x128x48xbf16, #tpu.memory_space<vmem>>, vector<1x128x48xbf16>
    %2 = vector.shape_cast %1 : vector<1x128x48xbf16> to vector<128x48xbf16>
    %c0_2 = arith.constant 0 : index
    %c0_3 = arith.constant 0 : index
    %c0_4 = arith.constant 0 : index
    %3 = vector.load %arg2[%c0_2, %c0_3, %c0_4] : memref<3x48x64xbf16, #tpu.memory_space<vmem>>, vector<1x48x64xbf16>
    %4 = vector.shape_cast %3 : vector<1x48x64xbf16> to vector<48x64xbf16>
    %cst_5 = arith.constant dense<0.000000e+00> : vector<128x64xf32>
    %5 = tpu.matmul %2, %4, %cst_5 {dimension_numbers = #tpu.dot_dimension_numbers<[1], [0], [0], [1], [0, 0, 1, 1], [], []>} : vector<128x48xbf16>, vector<48x64xbf16>, vector<128x64xf32> -> vector<128x64xf32>
    %6 = arith.addf %0, %5 : vector<128x64xf32>
    %c1 = arith.constant 1 : index
    %c0_6 = arith.constant 0 : index
    %c0_7 = arith.constant 0 : index
    %7 = vector.load %arg1[%c1, %c0_6, %c0_7] : memref<3x128x48xbf16, #tpu.memory_space<vmem>>, vector<1x128x48xbf16>
    %8 = vector.shape_cast %7 : vector<1x128x48xbf16> to vector<128x48xbf16>
    %c1_8 = arith.constant 1 : index
    %c0_9 = arith.constant 0 : index
    %c0_10 = arith.constant 0 : index
    %9 = vector.load %arg2[%c1_8, %c0_9, %c0_10] : memref<3x48x64xbf16, #tpu.memory_space<vmem>>, vector<1x48x64xbf16>
    %10 = vector.shape_cast %9 : vector<1x48x64xbf16> to vector<48x64xbf16>
    %cst_11 = arith.constant dense<0.000000e+00> : vector<128x64xf32>
    %11 = tpu.matmul %8, %10, %cst_11 {dimension_numbers = #tpu.dot_dimension_numbers<[1], [0], [0], [1], [0, 0, 1, 1], [], []>} : vector<128x48xbf16>, vector<48x64xbf16>, vector<128x64xf32> -> vector<128x64xf32>
    %12 = arith.addf %6, %11 : vector<128x64xf32>
    %c2 = arith.constant 2 : index
    %c0_12 = arith.constant 0 : index
    %c0_13 = arith.constant 0 : index
    %13 = vector.load %arg1[%c2, %c0_12, %c0_13] : memref<3x128x48xbf16, #tpu.memory_space<vmem>>, vector<1x128x48xbf16>
    %14 = vector.shape_cast %13 : vector<1x128x48xbf16> to vector<128x48xbf16>
    %c2_14 = arith.constant 2 : index
    %c0_15 = arith.constant 0 : index
    %c0_16 = arith.constant 0 : index
    %15 = vector.load %arg2[%c2_14, %c0_15, %c0_16] : memref<3x48x64xbf16, #tpu.memory_space<vmem>>, vector<1x48x64xbf16>
    %16 = vector.shape_cast %15 : vector<1x48x64xbf16> to vector<48x64xbf16>
    %cst_17 = arith.constant dense<0.000000e+00> : vector<128x64xf32>
    %17 = tpu.matmul %14, %16, %cst_17 {dimension_numbers = #tpu.dot_dimension_numbers<[1], [0], [0], [1], [0, 0, 1, 1], [], []>} : vector<128x48xbf16>, vector<48x64xbf16>, vector<128x64xf32> -> vector<128x64xf32>
    %18 = arith.addf %12, %17 : vector<128x64xf32>
    %c0_18 = arith.constant 0 : index
    %c0_19 = arith.constant 0 : index
    %19 = vector.load %arg3[%c0_18, %c0_19] : memref<1x64xf32, #tpu.memory_space<vmem>>, vector<1x64xf32>
    %20 = vector.broadcast %19 : vector<1x64xf32> to vector<128x64xf32>
    %21 = arith.addf %18, %20 : vector<128x64xf32>
    %22 = vector.shape_cast %21 : vector<128x64xf32> to vector<8x16x64xf32>
    %cst_20 = arith.constant dense<0xFF800000> : vector<8x64xf32>
    %23 = vector.multi_reduction <maximumf>, %22, %cst_20 [1] : vector<8x16x64xf32> to vector<8x64xf32>
    %cst_21 = arith.constant 0.000000e+00 : f32
    %24 = vector.broadcast %cst_21 : f32 to vector<8x64xf32>
    %25 = arith.maximumf %23, %24 : vector<8x64xf32>
    %c0_22 = arith.constant 0 : index
    %c0_23 = arith.constant 0 : index
    %26 = vector.load %arg4[%c0_22, %c0_23] : memref<12x64xbf16, #tpu.memory_space<vmem>>, vector<12x64xbf16>
    %c0_24 = arith.constant 0 : index
    %c0_25 = arith.constant 0 : index
    %27 = vector.load %arg6[%c0_24, %c0_25] : memref<8x12xbf16, #tpu.memory_space<vmem>>, vector<8x12xbf16>
    %cst_26 = arith.constant dense<0.000000e+00> : vector<8x64xf32>
    %28 = tpu.matmul %27, %26, %cst_26 {dimension_numbers = #tpu.dot_dimension_numbers<[1], [0], [0], [1], [0, 0, 1, 1], [], []>} : vector<8x12xbf16>, vector<12x64xbf16>, vector<8x64xf32> -> vector<8x64xf32>
    %29 = arith.mulf %25, %28 : vector<8x64xf32>
    %cst_27 = arith.constant dense<0.000000e+00> : vector<8xf32>
    %30 = vector.multi_reduction <add>, %29, %cst_27 [1] : vector<8x64xf32> to vector<8xf32>
    %31 = vector.shape_cast %30 : vector<8xf32> to vector<4x2xf32>
    %cst_28 = arith.constant dense<0xFF800000> : vector<4xf32>
    %32 = vector.multi_reduction <maximumf>, %31, %cst_28 [1] : vector<4x2xf32> to vector<4xf32>
    %33 = vector.shape_cast %32 : vector<4xf32> to vector<4x1xf32>
    %34 = vector.broadcast %33 : vector<4x1xf32> to vector<4x2xf32>
    %35 = arith.subf %31, %34 : vector<4x2xf32>
    %36 = math.exp %35 : vector<4x2xf32>
    %cst_29 = arith.constant dense<0.000000e+00> : vector<4xf32>
    %37 = vector.multi_reduction <add>, %36, %cst_29 [1] : vector<4x2xf32> to vector<4xf32>
    %38 = vector.shape_cast %37 : vector<4xf32> to vector<4x1xf32>
    %39 = vector.broadcast %38 : vector<4x1xf32> to vector<4x2xf32>
    %40 = arith.divf %36, %39 : vector<4x2xf32>
    %41 = vector.shape_cast %25 : vector<8x64xf32> to vector<4x2x64xf32>
    %42 = vector.shape_cast %40 : vector<4x2xf32> to vector<4x2x1xf32>
    %43 = vector.broadcast %42 : vector<4x2x1xf32> to vector<4x2x64xf32>
    %44 = arith.mulf %43, %41 : vector<4x2x64xf32>
    %cst_30 = arith.constant dense<0.000000e+00> : vector<4x64xf32>
    %45 = vector.multi_reduction <add>, %44, %cst_30 [1] : vector<4x2x64xf32> to vector<4x64xf32>
    %46 = arith.truncf %45 : vector<4x64xf32> to vector<4x64xbf16>
    %cst_31 = arith.constant dense<0.000000e+00> : vector<4x12xf32>
    %47 = tpu.matmul %46, %26, %cst_31 {dimension_numbers = #tpu.dot_dimension_numbers<[1], [1], [0], [0], [0, 0, 1, 0], [], []>} : vector<4x64xbf16>, vector<12x64xbf16>, vector<4x12xf32> -> vector<4x12xf32>
    %c0_32 = arith.constant 0 : index
    %c0_33 = arith.constant 0 : index
    %48 = vector.load %arg5[%c0_32, %c0_33] : memref<1x12xf32, #tpu.memory_space<vmem>>, vector<1x12xf32>
    %49 = vector.broadcast %48 : vector<1x12xf32> to vector<4x12xf32>
    %50 = arith.addf %47, %49 : vector<4x12xf32>
    %cst_34 = arith.constant dense<0xFF800000> : vector<4xf32>
    %51 = vector.multi_reduction <maximumf>, %50, %cst_34 [1] : vector<4x12xf32> to vector<4xf32>
    %52 = vector.shape_cast %51 : vector<4xf32> to vector<4x1xf32>
    %53 = vector.broadcast %52 : vector<4x1xf32> to vector<4x12xf32>
    %54 = arith.subf %50, %53 : vector<4x12xf32>
    %55 = math.exp %54 : vector<4x12xf32>
    %cst_35 = arith.constant dense<0.000000e+00> : vector<4xf32>
    %56 = vector.multi_reduction <add>, %55, %cst_35 [1] : vector<4x12xf32> to vector<4xf32>
    %57 = vector.shape_cast %56 : vector<4xf32> to vector<4x1xf32>
    %58 = math.log %57 : vector<4x1xf32>
    %59 = arith.addf %52, %58 : vector<4x1xf32>
    %60 = vector.broadcast %59 : vector<4x1xf32> to vector<4x12xf32>
    %61 = arith.subf %50, %60 : vector<4x12xf32>
    %c0_36 = arith.constant 0 : index
    %c0_37 = arith.constant 0 : index
    %62 = vector.load %arg7[%c0_36, %c0_37] : memref<4x12xf32, #tpu.memory_space<vmem>>, vector<4x12xf32>
    %63 = arith.mulf %62, %61 : vector<4x12xf32>
    %cst_38 = arith.constant dense<0.000000e+00> : vector<4xf32>
    %64 = vector.multi_reduction <add>, %63, %cst_38 [1] : vector<4x12xf32> to vector<4xf32>
    %65 = vector.shape_cast %64 : vector<4xf32> to vector<4x1xf32>
    %cst_39 = arith.constant 0.000000e+00 : f32
    %66 = vector.broadcast %cst_39 : f32 to vector<4x1xf32>
    %67 = arith.subf %66, %65 : vector<4x1xf32>
    %cst_40 = arith.constant dense<0.000000e+00> : vector<1xf32>
    %68 = vector.multi_reduction <add>, %67, %cst_40 [0] : vector<4x1xf32> to vector<1xf32>
    %69 = vector.shape_cast %68 : vector<1xf32> to vector<1x1xf32>
    %cst_41 = arith.constant 4.000000e+00 : f32
    %70 = vector.broadcast %cst_41 : f32 to vector<1x1xf32>
    %71 = arith.divf %69, %70 : vector<1x1xf32>
    %c0_42 = arith.constant 0 : index
    %c0_43 = arith.constant 0 : index
    %72 = vector.load %arg8[%c0_42, %c0_43] : memref<1x1xf32, #tpu.memory_space<vmem>>, vector<1x1xf32>
    tpu.vector_store %arg8[%c0_42, %c0_43], %71 {strides = array<i32>} : memref<1x1xf32, #tpu.memory_space<vmem>>, vector<1x1xf32>,
    return
  }
  func.func @transform_0(%arg0: i32) -> (i32, i32, i32) {
    %c0_i32 = arith.constant 0 : i32
    %c0_i32_0 = arith.constant 0 : i32
    %c0_i32_1 = arith.constant 0 : i32
    %c0_i32_2 = arith.constant 0 : i32
    return %c0_i32, %c0_i32_0, %c0_i32_1 : i32, i32, i32
  }
  func.func @transform_1(%arg0: i32) -> (i32, i32, i32) {
    %c0_i32 = arith.constant 0 : i32
    %c0_i32_0 = arith.constant 0 : i32
    %c0_i32_1 = arith.constant 0 : i32
    %c0_i32_2 = arith.constant 0 : i32
    return %c0_i32, %c0_i32_0, %c0_i32_1 : i32, i32, i32
  }
  func.func @transform_2(%arg0: i32) -> (i32, i32) {
    %c0_i32 = arith.constant 0 : i32
    %c0_i32_0 = arith.constant 0 : i32
    %c0_i32_1 = arith.constant 0 : i32
    return %c0_i32, %c0_i32_0 : i32, i32
  }
  func.func @transform_3(%arg0: i32) -> (i32, i32) {
    %c0_i32 = arith.constant 0 : i32
    %c0_i32_0 = arith.constant 0 : i32
    %c0_i32_1 = arith.constant 0 : i32
    return %c0_i32, %c0_i32_0 : i32, i32
  }
  func.func @transform_4(%arg0: i32) -> (i32, i32) {
    %c0_i32 = arith.constant 0 : i32
    %c0_i32_0 = arith.constant 0 : i32
    %c0_i32_1 = arith.constant 0 : i32
    return %c0_i32, %c0_i32_0 : i32, i32
  }
  func.func @transform_5(%arg0: i32) -> (i32, i32) {
    %c0_i32 = arith.constant 0 : i32
    %c0_i32_0 = arith.constant 0 : i32
    %c0_i32_1 = arith.constant 0 : i32
    return %c0_i32, %c0_i32_0 : i32, i32
  }
  func.func @transform_6(%arg0: i32) -> (i32, i32) {
    %c0_i32 = arith.constant 0 : i32
    %c0_i32_0 = arith.constant 0 : i32
    %c0_i32_1 = arith.constant 0 : i32
    return %c0_i32, %c0_i32_0 : i32, i32
  }
  func.func @transform_7(%arg0: i32) -> (i32, i32) {
    %c0_i32 = arith.constant 0 : i32
    %c0_i32_0 = arith.constant 0 : i32
    %c0_i32_1 = arith.constant 0 : i32
    return %c0_i32, %c0_i32_0 : i32, i32
  }
}

</mosaic_0001>

<llo_original>
// kernel: tpu_custom_call.1
$region0: #{tpu_custom_call.1}
  #allocation0 [shape = 'u32[]', space=smem, size = 0x4, offset = 0x4, fixed_abs, tag = 'smem constant byte address 0x4 - core index']
  #allocation1 [shape = 'u32[144,128]{1,0:T(1,128)}', space=vmem, size = 0x12000, scoped, tag = 'internal scratch']
  %s0 = inlined_call_operand.vmem [shape: bf16[3,128,48], index: 0, kind: input, shape index: {}]
  %s1 = inlined_call_operand.vmem [shape: bf16[3,48,64], index: 1, kind: input, shape index: {}]
  %s2 = inlined_call_operand.vmem [shape: f32[1,64], index: 2, kind: input, shape index: {}]
  %s3 = inlined_call_operand.vmem [shape: bf16[12,64], index: 3, kind: input, shape index: {}]
  %s4 = inlined_call_operand.vmem [shape: f32[1,12], index: 4, kind: input, shape index: {}]
  %s5 = inlined_call_operand.vmem [shape: bf16[8,12], index: 5, kind: input, shape index: {}]
  %s6 = inlined_call_operand.vmem [shape: f32[4,12], index: 6, kind: input, shape index: {}]
  %s7 = inlined_call_operand.hbm [shape: f32[1,1], index: 7, kind: output, shape index: {}]
  %s8 = sld [smem:[#allocation0]]
  $region38: #{tpu_custom_call.1} parent=0
    _
  %s10 = ssub.s32 1, %s8
  %s11 = scalar_select 0, %s10, %s8
  $region1: #{tpu_custom_call.1} parent=0
    #allocation2 [shape = 'u8[512]{0}', space=vmem, size = 0x400, scoped, tag = 'output window, operand 0, single buffered']
    #allocation3 [shape = 's32[1]{0}', space=sflag, size = 0x4, scoped, tag = 'scoped memory for tpu_custom_call.1']
    %12 = vsyncpa [#allocation3], 0
    // Predicated region
    $region2: #{tpu_custom_call.1} parent=1 // pred_check
      _
    $region3: #{tpu_custom_call.1} parent=1 // pred_check_branch
      %14 = sbr.rel (0) target = $region5
    $region4: #{tpu_custom_call.1} parent=1 // pred_region
      _
    $region5: #{tpu_custom_call.1} parent=1 // pred_fallthru
      _
    // Predicated region
    $region6: #{tpu_custom_call.1} parent=1 // pred_check
      _
    $region7: #{tpu_custom_call.1} parent=1 // pred_check_branch
      %16 = sbr.rel (0) target = $region9
    $region8: #{tpu_custom_call.1} parent=1 // pred_region
      _
    $region9: #{tpu_custom_call.1} parent=1 // pred_fallthru
      _
    // Predicated region
    $region10: #{tpu_custom_call.1} parent=1 // pred_check
      _
    $region11: #{tpu_custom_call.1} parent=1 // pred_check_branch
      %18 = sbr.rel (0) target = $region13
    $region12: #{tpu_custom_call.1} parent=1 // pred_region
      _
    $region13: #{tpu_custom_call.1} parent=1 // pred_fallthru
      _
    // Predicated region
    $region14: #{tpu_custom_call.1} parent=1 // pred_check
      _
    $region15: #{tpu_custom_call.1} parent=1 // pred_check_branch
      %20 = sbr.rel (0) target = $region17
    $region16: #{tpu_custom_call.1} parent=1 // pred_region
      _
    $region17: #{tpu_custom_call.1} parent=1 // pred_fallthru
      _
    // Predicated region
    $region18: #{tpu_custom_call.1} parent=1 // pred_check
      _
    $region19: #{tpu_custom_call.1} parent=1 // pred_check_branch
      %22 = sbr.rel (0) target = $region21
    $region20: #{tpu_custom_call.1} parent=1 // pred_region
      _
    $region21: #{tpu_custom_call.1} parent=1 // pred_fallthru
      _
    // Predicated region
    $region22: #{tpu_custom_call.1} parent=1 // pred_check
      _
    $region23: #{tpu_custom_call.1} parent=1 // pred_check_branch
      %24 = sbr.rel (0) target = $region25
    $region24: #{tpu_custom_call.1} parent=1 // pred_region
      _
    $region25: #{tpu_custom_call.1} parent=1 // pred_fallthru
      _
    // Predicated region
    $region26: #{tpu_custom_call.1} parent=1 // pred_check
      _
    $region27: #{tpu_custom_call.1} parent=1 // pred_check_branch
      %26 = sbr.rel (0) target = $region29
    $region28: #{tpu_custom_call.1} parent=1 // pred_region
      _
    $region29: #{tpu_custom_call.1} parent=1 // pred_fallthru
      _
    %v28 = vld [vmem:[%s0] sm:$0xf]
    %v29 = vld [vmem:[%s0 + $0x4] sm:$0xf]
    %v30 = vld [vmem:[%s0 + $0x8] sm:$0xf]
    %v31 = vld [vmem:[%s0 + $0xc] sm:$0xf]
    %v32 = vld [vmem:[%s0 + $0x10] sm:$0xf]
    %v33 = vld [vmem:[%s0 + $0x14] sm:$0xf]
    %v34 = vld [vmem:[%s0 + $0x18] sm:$0xf]
    %v35 = vld [vmem:[%s0 + $0x1c] sm:$0xf]
    %v36 = vld [vmem:[%s0 + $0x20] sm:$0xf]
    %v37 = vld [vmem:[%s0 + $0x24] sm:$0xf]
    %v38 = vld [vmem:[%s0 + $0x28] sm:$0xf]
    %v39 = vld [vmem:[%s0 + $0x2c] sm:$0xf]
    %v40 = vld [vmem:[%s0 + $0x30] sm:$0xf]
    %v41 = vld [vmem:[%s0 + $0x34] sm:$0xf]
    %v42 = vld [vmem:[%s0 + $0x38] sm:$0xf]
    %v43 = vld [vmem:[%s0 + $0x3c] sm:$0xf]
    %v44 = vld [vmem:[%s1] sm:$0xf]
    %v45 = vld [vmem:[%s1 + $0x4] sm:$0xf]
    %v46 = vld [vmem:[%s1 + $0x8] sm:$0xf]
    %v47 = vld [vmem:[%s1 + $0xc] sm:$0xf]
    %v48 = vld [vmem:[%s1 + $0x10] sm:$0xf]
    %v49 = vld [vmem:[%s1 + $0x14] sm:$0xf]
    %s50 = scalar_lea.vmem %s0, 64
    %v51 = vld [vmem:[%s50] sm:$0xf]
    %v52 = vld [vmem:[%s50 + $0x4] sm:$0xf]
    %v53 = vld [vmem:[%s50 + $0x8] sm:$0xf]
    %v54 = vld [vmem:[%s50 + $0xc] sm:$0xf]
    %v55 = vld [vmem:[%s50 + $0x10] sm:$0xf]
    %v56 = vld [vmem:[%s50 + $0x14] sm:$0xf]
    %v57 = vld [vmem:[%s50 + $0x18] sm:$0xf]
    %v58 = vld [vmem:[%s50 + $0x1c] sm:$0xf]
    %v59 = vld [vmem:[%s50 + $0x20] sm:$0xf]
    %v60 = vld [vmem:[%s50 + $0x24] sm:$0xf]
    %v61 = vld [vmem:[%s50 + $0x28] sm:$0xf]
    %v62 = vld [vmem:[%s50 + $0x2c] sm:$0xf]
    %v63 = vld [vmem:[%s50 + $0x30] sm:$0xf]
    %v64 = vld [vmem:[%s50 + $0x34] sm:$0xf]
    %v65 = vld [vmem:[%s50 + $0x38] sm:$0xf]
    %v66 = vld [vmem:[%s50 + $0x3c] sm:$0xf]
    %s67 = scalar_lea.vmem %s1, 24
    %v68 = vld [vmem:[%s67] sm:$0xf]
    %v69 = vld [vmem:[%s67 + $0x4] sm:$0xf]
    %v70 = vld [vmem:[%s67 + $0x8] sm:$0xf]
    %v71 = vld [vmem:[%s67 + $0xc] sm:$0xf]
    %v72 = vld [vmem:[%s67 + $0x10] sm:$0xf]
    %v73 = vld [vmem:[%s67 + $0x14] sm:$0xf]
    %v90 = vunpack.c.l.b16 %v51
    %v91 = vunpack.c.l.b16 %v52
    %v92 = vunpack.c.l.b16 %v53
    %v93 = vunpack.c.l.b16 %v54
    %v94 = vunpack.c.l.b16 %v55
    %v95 = vunpack.c.l.b16 %v56
    %v96 = vunpack.c.l.b16 %v57
    %v97 = vunpack.c.l.b16 %v58
    %v98 = vunpack.c.l.b16 %v59
    %v99 = vunpack.c.l.b16 %v60
    %v100 = vunpack.c.l.b16 %v61
    %v101 = vunpack.c.l.b16 %v62
    %v102 = vunpack.c.l.b16 %v63
    %v103 = vunpack.c.l.b16 %v64
    %v104 = vunpack.c.l.b16 %v65
    %v105 = vunpack.c.l.b16 %v66
    %v106 = vpack.c.b16 %v91, %v90
    %v107 = vpack.c.b16 %v93, %v92
    %v108 = vpack.c.b16 %v95, %v94
    %v109 = vpack.c.b16 %v97, %v96
    %v110 = vpack.c.b16 %v99, %v98
    %v111 = vpack.c.b16 %v101, %v100
    %v112 = vpack.c.b16 %v103, %v102
    %v113 = vpack.c.b16 %v105, %v104
    %v120 = vunpack.c.l.b16 %v68
    %v121 = vunpack.c.l.b16 %v69
    %v122 = vunpack.c.l.b16 %v70
    %v123 = vunpack.c.l.b16 %v71
    %v124 = vunpack.c.l.b16 %v72
    %v125 = vunpack.c.l.b16 %v73
    %v126 = vpack.c.b16 %v121, %v120
    %v127 = vpack.c.b16 %v123, %v122
    %v128 = vpack.c.b16 %v125, %v124
    %vm132 = vcmask 392192
    %v134 = vsel %vm132, %v106, 0
    %v137 = vsel %vm132, %v107, 0
    %v140 = vsel %vm132, %v108, 0
    %v143 = vsel %vm132, %v109, 0
    %v146 = vsel %vm132, %v110, 0
    %v149 = vsel %vm132, %v111, 0
    %v152 = vsel %vm132, %v112, 0
    %v155 = vsel %vm132, %v113, 0
    %157 = vmatprep.subr.bf16.mxu0 0
    %158 = vmatpush1.bf16.msra.mxu0 %v126
    %159 = vmatprep.subr.bf16.mxu0 0
    %160 = vmatpush1.bf16.msra.mxu0 %v127
    %161 = vmatprep.subr.bf16.mxu0 0
    %162 = vmatpush1.bf16.msra.mxu0 %v128
    %163 = vmatprep.subr.bf16.mxu0 0
    %164 = vmatpush1.bf16.msra.mxu0 0
    %165 = vmatprep.subr.bf16.mxu0 0
    %166 = vmatpush1.bf16.msra.mxu0 0
    %167 = vmatprep.subr.bf16.mxu0 0
    %168 = vmatpush1.bf16.msra.mxu0 0
    %169 = vmatprep.subr.bf16.mxu0 0
    %170 = vmatpush1.bf16.msra.mxu0 0
    %171 = vmatprep.subr.bf16.mxu0 0
    %172 = vmatpush1.bf16.msra.mxu0 0
    %173 = vmatprep.subr.bf16.mxu0 0
    %174 = vmatpush1.bf16.msra.mxu0 0
    %175 = vmatprep.subr.bf16.mxu0 0
    %176 = vmatpush1.bf16.msra.mxu0 0
    %177 = vmatprep.subr.bf16.mxu0 0
    %178 = vmatpush1.bf16.msra.mxu0 0
    %179 = vmatprep.subr.bf16.mxu0 0
    %180 = vmatpush1.bf16.msra.mxu0 0
    %181 = vmatprep.subr.bf16.mxu0 0
    %182 = vmatpush1.bf16.msra.mxu0 0
    %183 = vmatprep.subr.bf16.mxu0 0
    %184 = vmatpush1.bf16.msra.mxu0 0
    %185 = vmatprep.subr.bf16.mxu0 0
    %186 = vmatpush1.bf16.msra.mxu0 0
    %187 = vmatprep.subr.bf16.mxu0 0
    %188 = vmatpush1.bf16.msra.mxu0 0
    %189 = vmatprep.mubr.bf16.mxu0 0
    %190 = vmatmul.mubr.bf16.gmra.mrb[0].mxu0 %v134
    %v191 = vpop.f32.mrb[0].mxu0
    %v192 = vadd.f32 0.0, %v191
    %v193 = vpop.f32.mrb[0].mxu0
    %v194 = vpop.f32.mrb[0].mxu0
    %v195 = vadd.f32 0.0, %v194
    %v196 = vpop.f32.mrb[0].mxu0
    %197 = vmatprep.mubr.bf16.mxu0 0
    %198 = vmatmul.mubr.bf16.gmra.mrb[0].mxu0 %v137
    %v199 = vpop.f32.mrb[0].mxu0
    %v200 = vadd.f32 0.0, %v199
    %v201 = vpop.f32.mrb[0].mxu0
    %v202 = vpop.f32.mrb[0].mxu0
    %v203 = vadd.f32 0.0, %v202
    %v204 = vpop.f32.mrb[0].mxu0
    %205 = vmatprep.mubr.bf16.mxu0 0
    %206 = vmatmul.mubr.bf16.gmra.mrb[0].mxu0 %v140
    %v207 = vpop.f32.mrb[0].mxu0
    %v208 = vadd.f32 0.0, %v207
    %v209 = vpop.f32.mrb[0].mxu0
    %v210 = vpop.f32.mrb[0].mxu0
    %v211 = vadd.f32 0.0, %v210
    %v212 = vpop.f32.mrb[0].mxu0
    %213 = vmatprep.mubr.bf16.mxu0 0
    %214 = vmatmul.mubr.bf16.gmra.mrb[0].mxu0 %v143
    %v215 = vpop.f32.mrb[0].mxu0
    %v216 = vadd.f32 0.0, %v215
    %v217 = vpop.f32.mrb[0].mxu0
    %v218 = vpop.f32.mrb[0].mxu0
    %v219 = vadd.f32 0.0, %v218
    %v220 = vpop.f32.mrb[0].mxu0
    %221 = vmatprep.mubr.bf16.mxu0 0
    %222 = vmatmul.mubr.bf16.gmra.mrb[0].mxu0 %v146
    %v223 = vpop.f32.mrb[0].mxu0
    %v224 = vadd.f32 0.0, %v223
    %v225 = vpop.f32.mrb[0].mxu0
    %v226 = vpop.f32.mrb[0].mxu0
    %v227 = vadd.f32 0.0, %v226
    %v228 = vpop.f32.mrb[0].mxu0
    %229 = vmatprep.mubr.bf16.mxu0 0
    %230 = vmatmul.mubr.bf16.gmra.mrb[0].mxu0 %v149
    %v231 = vpop.f32.mrb[0].mxu0
    %v232 = vadd.f32 0.0, %v231
    %v233 = vpop.f32.mrb[0].mxu0
    %v234 = vpop.f32.mrb[0].mxu0
    %v235 = vadd.f32 0.0, %v234
    %v236 = vpop.f32.mrb[0].mxu0
    %237 = vmatprep.mubr.bf16.mxu0 0
    %238 = vmatmul.mubr.bf16.gmra.mrb[0].mxu0 %v152
    %v239 = vpop.f32.mrb[0].mxu0
    %v240 = vadd.f32 0.0, %v239
    %v241 = vpop.f32.mrb[0].mxu0
    %v242 = vpop.f32.mrb[0].mxu0
    %v243 = vadd.f32 0.0, %v242
    %v244 = vpop.f32.mrb[0].mxu0
    %245 = vmatprep.mubr.bf16.mxu0 0
    %246 = vmatmul.mubr.bf16.gmra.mrb[0].mxu0 %v155
    %v247 = vpop.f32.mrb[0].mxu0
    %v248 = vadd.f32 0.0, %v247
    %v249 = vpop.f32.mrb[0].mxu0
    %v250 = vpop.f32.mrb[0].mxu0
    %v251 = vadd.f32 0.0, %v250
    %v252 = vpop.f32.mrb[0].mxu0
    %253 = vdwg.mxu0
    %v270 = vunpack.c.l.b16 %v28
    %v271 = vunpack.c.l.b16 %v29
    %v272 = vunpack.c.l.b16 %v30
    %v273 = vunpack.c.l.b16 %v31
    %v274 = vunpack.c.l.b16 %v32
    %v275 = vunpack.c.l.b16 %v33
    %v276 = vunpack.c.l.b16 %v34
    %v277 = vunpack.c.l.b16 %v35
    %v278 = vunpack.c.l.b16 %v36
    %v279 = vunpack.c.l.b16 %v37
    %v280 = vunpack.c.l.b16 %v38
    %v281 = vunpack.c.l.b16 %v39
    %v282 = vunpack.c.l.b16 %v40
    %v283 = vunpack.c.l.b16 %v41
    %v284 = vunpack.c.l.b16 %v42
    %v285 = vunpack.c.l.b16 %v43
    %v286 = vpack.c.b16 %v271, %v270
    %v287 = vpack.c.b16 %v273, %v272
    %v288 = vpack.c.b16 %v275, %v274
    %v289 = vpack.c.b16 %v277, %v276
    %v290 = vpack.c.b16 %v279, %v278
    %v291 = vpack.c.b16 %v281, %v280
    %v292 = vpack.c.b16 %v283, %v282
    %v293 = vpack.c.b16 %v285, %v284
    %v300 = vunpack.c.l.b16 %v44
    %v301 = vunpack.c.l.b16 %v45
    %v302 = vunpack.c.l.b16 %v46
    %v303 = vunpack.c.l.b16 %v47
    %v304 = vunpack.c.l.b16 %v48
    %v305 = vunpack.c.l.b16 %v49
    %v306 = vpack.c.b16 %v301, %v300
    %v307 = vpack.c.b16 %v303, %v302
    %v308 = vpack.c.b16 %v305, %v304
    %v313 = vsel %vm132, %v286, 0
    %v316 = vsel %vm132, %v287, 0
    %v319 = vsel %vm132, %v288, 0
    %v322 = vsel %vm132, %v289, 0
    %v325 = vsel %vm132, %v290, 0
    %v328 = vsel %vm132, %v291, 0
    %v331 = vsel %vm132, %v292, 0
    %v334 = vsel %vm132, %v293, 0
    %336 = vmatprep.subr.bf16.mxu0 0
    %337 = vmatpush1.bf16.msra.mxu0 %v306
    %338 = vmatprep.subr.bf16.mxu0 0
    %339 = vmatpush1.bf16.msra.mxu0 %v307
    %340 = vmatprep.subr.bf16.mxu0 0
    %341 = vmatpush1.bf16.msra.mxu0 %v308
    %342 = vmatprep.subr.bf16.mxu0 0
    %343 = vmatpush1.bf16.msra.mxu0 0
    %344 = vmatprep.subr.bf16.mxu0 0
    %345 = vmatpush1.bf16.msra.mxu0 0
    %346 = vmatprep.subr.bf16.mxu0 0
    %347 = vmatpush1.bf16.msra.mxu0 0
    %348 = vmatprep.subr.bf16.mxu0 0
    %349 = vmatpush1.bf16.msra.mxu0 0
    %350 = vmatprep.subr.bf16.mxu0 0
    %351 = vmatpush1.bf16.msra.mxu0 0
    %352 = vmatprep.subr.bf16.mxu0 0
    %353 = vmatpush1.bf16.msra.mxu0 0
    %354 = vmatprep.subr.bf16.mxu0 0
    %355 = vmatpush1.bf16.msra.mxu0 0
    %356 = vmatprep.subr.bf16.mxu0 0
    %357 = vmatpush1.bf16.msra.mxu0 0
    %358 = vmatprep.subr.bf16.mxu0 0
    %359 = vmatpush1.bf16.msra.mxu0 0
    %360 = vmatprep.subr.bf16.mxu0 0
    %361 = vmatpush1.bf16.msra.mxu0 0
    %362 = vmatprep.subr.bf16.mxu0 0
    %363 = vmatpush1.bf16.msra.mxu0 0
    %364 = vmatprep.subr.bf16.mxu0 0
    %365 = vmatpush1.bf16.msra.mxu0 0
    %366 = vmatprep.subr.bf16.mxu0 0
    %367 = vmatpush1.bf16.msra.mxu0 0
    %368 = vmatprep.mubr.bf16.mxu0 0
    %369 = vmatmul.mubr.bf16.gmra.mrb[0].mxu0 %v313
    %v370 = vpop.f32.mrb[0].mxu0
    %v371 = vadd.f32 %v192, %v370
    %v372 = vpop.f32.mrb[0].mxu0
    %v373 = vpop.f32.mrb[0].mxu0
    %v374 = vadd.f32 %v195, %v373
    %v375 = vpop.f32.mrb[0].mxu0
    %376 = vmatprep.mubr.bf16.mxu0 0
    %377 = vmatmul.mubr.bf16.gmra.mrb[0].mxu0 %v316
    %v378 = vpop.f32.mrb[0].mxu0
    %v379 = vadd.f32 %v200, %v378
    %v380 = vpop.f32.mrb[0].mxu0
    %v381 = vpop.f32.mrb[0].mxu0
    %v382 = vadd.f32 %v203, %v381
    %v383 = vpop.f32.mrb[0].mxu0
    %384 = vmatprep.mubr.bf16.mxu0 0
    %385 = vmatmul.mubr.bf16.gmra.mrb[0].mxu0 %v319
    %v386 = vpop.f32.mrb[0].mxu0
    %v387 = vadd.f32 %v208, %v386
    %v388 = vpop.f32.mrb[0].mxu0
    %v389 = vpop.f32.mrb[0].mxu0
    %v390 = vadd.f32 %v211, %v389
    %v391 = vpop.f32.mrb[0].mxu0
    %392 = vmatprep.mubr.bf16.mxu0 0
    %393 = vmatmul.mubr.bf16.gmra.mrb[0].mxu0 %v322
    %v394 = vpop.f32.mrb[0].mxu0
    %v395 = vadd.f32 %v216, %v394
    %v396 = vpop.f32.mrb[0].mxu0
    %v397 = vpop.f32.mrb[0].mxu0
    %v398 = vadd.f32 %v219, %v397
    %v399 = vpop.f32.mrb[0].mxu0
    %400 = vmatprep.mubr.bf16.mxu0 0
    %401 = vmatmul.mubr.bf16.gmra.mrb[0].mxu0 %v325
    %v402 = vpop.f32.mrb[0].mxu0
    %v403 = vadd.f32 %v224, %v402
    %v404 = vpop.f32.mrb[0].mxu0
    %v405 = vpop.f32.mrb[0].mxu0
    %v406 = vadd.f32 %v227, %v405
    %v407 = vpop.f32.mrb[0].mxu0
    %408 = vmatprep.mubr.bf16.mxu0 0
    %409 = vmatmul.mubr.bf16.gmra.mrb[0].mxu0 %v328
    %v410 = vpop.f32.mrb[0].mxu0
    %v411 = vadd.f32 %v232, %v410
    %v412 = vpop.f32.mrb[0].mxu0
    %v413 = vpop.f32.mrb[0].mxu0
    %v414 = vadd.f32 %v235, %v413
    %v415 = vpop.f32.mrb[0].mxu0
    %416 = vmatprep.mubr.bf16.mxu0 0
    %417 = vmatmul.mubr.bf16.gmra.mrb[0].mxu0 %v331
    %v418 = vpop.f32.mrb[0].mxu0
    %v419 = vadd.f32 %v240, %v418
    %v420 = vpop.f32.mrb[0].mxu0
    %v421 = vpop.f32.mrb[0].mxu0
    %v422 = vadd.f32 %v243, %v421
    %v423 = vpop.f32.mrb[0].mxu0
    %424 = vmatprep.mubr.bf16.mxu0 0
    %425 = vmatmul.mubr.bf16.gmra.mrb[0].mxu0 %v334
    %v426 = vpop.f32.mrb[0].mxu0
    %v427 = vadd.f32 %v248, %v426
    %v428 = vpop.f32.mrb[0].mxu0
    %v429 = vpop.f32.mrb[0].mxu0
    %v430 = vadd.f32 %v251, %v429
    %v431 = vpop.f32.mrb[0].mxu0
    %432 = vdwg.mxu0
    %s433 = scalar_lea.vmem %s0, 128
    %v434 = vld [vmem:[%s433] sm:$0xf]
    %v435 = vld [vmem:[%s433 + $0x4] sm:$0xf]
    %v436 = vld [vmem:[%s433 + $0x8] sm:$0xf]
    %v437 = vld [vmem:[%s433 + $0xc] sm:$0xf]
    %v438 = vld [vmem:[%s433 + $0x10] sm:$0xf]
    %v439 = vld [vmem:[%s433 + $0x14] sm:$0xf]
    %v440 = vld [vmem:[%s433 + $0x18] sm:$0xf]
    %v441 = vld [vmem:[%s433 + $0x1c] sm:$0xf]
    %v442 = vld [vmem:[%s433 + $0x20] sm:$0xf]
    %v443 = vld [vmem:[%s433 + $0x24] sm:$0xf]
    %v444 = vld [vmem:[%s433 + $0x28] sm:$0xf]
    %v445 = vld [vmem:[%s433 + $0x2c] sm:$0xf]
    %v446 = vld [vmem:[%s433 + $0x30] sm:$0xf]
    %v447 = vld [vmem:[%s433 + $0x34] sm:$0xf]
    %v448 = vld [vmem:[%s433 + $0x38] sm:$0xf]
    %v449 = vld [vmem:[%s433 + $0x3c] sm:$0xf]
    %s450 = scalar_lea.vmem %s1, 48
    %v451 = vld [vmem:[%s450] sm:$0xf]
    %v452 = vld [vmem:[%s450 + $0x4] sm:$0xf]
    %v453 = vld [vmem:[%s450 + $0x8] sm:$0xf]
    %v454 = vld [vmem:[%s450 + $0xc] sm:$0xf]
    %v455 = vld [vmem:[%s450 + $0x10] sm:$0xf]
    %v456 = vld [vmem:[%s450 + $0x14] sm:$0xf]
    %v473 = vunpack.c.l.b16 %v434
    %v474 = vunpack.c.l.b16 %v435
    %v475 = vunpack.c.l.b16 %v436
    %v476 = vunpack.c.l.b16 %v437
    %v477 = vunpack.c.l.b16 %v438
    %v478 = vunpack.c.l.b16 %v439
    %v479 = vunpack.c.l.b16 %v440
    %v480 = vunpack.c.l.b16 %v441
    %v481 = vunpack.c.l.b16 %v442
    %v482 = vunpack.c.l.b16 %v443
    %v483 = vunpack.c.l.b16 %v444
    %v484 = vunpack.c.l.b16 %v445
    %v485 = vunpack.c.l.b16 %v446
    %v486 = vunpack.c.l.b16 %v447
    %v487 = vunpack.c.l.b16 %v448
    %v488 = vunpack.c.l.b16 %v449
    %v489 = vpack.c.b16 %v474, %v473
    %v490 = vpack.c.b16 %v476, %v475
    %v491 = vpack.c.b16 %v478, %v477
    %v492 = vpack.c.b16 %v480, %v479
    %v493 = vpack.c.b16 %v482, %v481
    %v494 = vpack.c.b16 %v484, %v483
    %v495 = vpack.c.b16 %v486, %v485
    %v496 = vpack.c.b16 %v488, %v487
    %v503 = vunpack.c.l.b16 %v451
    %v504 = vunpack.c.l.b16 %v452
    %v505 = vunpack.c.l.b16 %v453
    %v506 = vunpack.c.l.b16 %v454
    %v507 = vunpack.c.l.b16 %v455
    %v508 = vunpack.c.l.b16 %v456
    %v509 = vpack.c.b16 %v504, %v503
    %v510 = vpack.c.b16 %v506, %v505
    %v511 = vpack.c.b16 %v508, %v507
    %v516 = vsel %vm132, %v489, 0
    %v519 = vsel %vm132, %v490, 0
    %v522 = vsel %vm132, %v491, 0
    %v525 = vsel %vm132, %v492, 0
    %v528 = vsel %vm132, %v493, 0
    %v531 = vsel %vm132, %v494, 0
    %v534 = vsel %vm132, %v495, 0
    %v537 = vsel %vm132, %v496, 0
    %539 = vmatprep.subr.bf16.mxu0 0
    %540 = vmatpush1.bf16.msra.mxu0 %v509
    %541 = vmatprep.subr.bf16.mxu0 0
    %542 = vmatpush1.bf16.msra.mxu0 %v510
    %543 = vmatprep.subr.bf16.mxu0 0
    %544 = vmatpush1.bf16.msra.mxu0 %v511
    %545 = vmatprep.subr.bf16.mxu0 0
    %546 = vmatpush1.bf16.msra.mxu0 0
    %547 = vmatprep.subr.bf16.mxu0 0
    %548 = vmatpush1.bf16.msra.mxu0 0
    %549 = vmatprep.subr.bf16.mxu0 0
    %550 = vmatpush1.bf16.msra.mxu0 0
    %551 = vmatprep.subr.bf16.mxu0 0
    %552 = vmatpush1.bf16.msra.mxu0 0
    %553 = vmatprep.subr.bf16.mxu0 0
    %554 = vmatpush1.bf16.msra.mxu0 0
    %555 = vmatprep.subr.bf16.mxu0 0
    %556 = vmatpush1.bf16.msra.mxu0 0
    %557 = vmatprep.subr.bf16.mxu0 0
    %558 = vmatpush1.bf16.msra.mxu0 0
    %559 = vmatprep.subr.bf16.mxu0 0
    %560 = vmatpush1.bf16.msra.mxu0 0
    %561 = vmatprep.subr.bf16.mxu0 0
    %562 = vmatpush1.bf16.msra.mxu0 0
    %563 = vmatprep.subr.bf16.mxu0 0
    %564 = vmatpush1.bf16.msra.mxu0 0
    %565 = vmatprep.subr.bf16.mxu0 0
    %566 = vmatpush1.bf16.msra.mxu0 0
    %567 = vmatprep.subr.bf16.mxu0 0
    %568 = vmatpush1.bf16.msra.mxu0 0
    %569 = vmatprep.subr.bf16.mxu0 0
    %570 = vmatpush1.bf16.msra.mxu0 0
    %571 = vmatprep.mubr.bf16.mxu0 0
    %572 = vmatmul.mubr.bf16.gmra.mrb[0].mxu0 %v516
    %v573 = vpop.f32.mrb[0].mxu0
    %v574 = vadd.f32 0.0, %v573
    %v575 = vpop.f32.mrb[0].mxu0
    %v576 = vpop.f32.mrb[0].mxu0
    %v577 = vadd.f32 0.0, %v576
    %v578 = vpop.f32.mrb[0].mxu0
    %579 = vmatprep.mubr.bf16.mxu0 0
    %580 = vmatmul.mubr.bf16.gmra.mrb[0].mxu0 %v519
    %v581 = vpop.f32.mrb[0].mxu0
    %v582 = vadd.f32 0.0, %v581
    %v583 = vpop.f32.mrb[0].mxu0
    %v584 = vpop.f32.mrb[0].mxu0
    %v585 = vadd.f32 0.0, %v584
    %v586 = vpop.f32.mrb[0].mxu0
    %587 = vmatprep.mubr.bf16.mxu0 0
    %588 = vmatmul.mubr.bf16.gmra.mrb[0].mxu0 %v522
    %v589 = vpop.f32.mrb[0].mxu0
    %v590 = vadd.f32 0.0, %v589
    %v591 = vpop.f32.mrb[0].mxu0
    %v592 = vpop.f32.mrb[0].mxu0
    %v593 = vadd.f32 0.0, %v592
    %v594 = vpop.f32.mrb[0].mxu0
    %595 = vmatprep.mubr.bf16.mxu0 0
    %596 = vmatmul.mubr.bf16.gmra.mrb[0].mxu0 %v525
    %v597 = vpop.f32.mrb[0].mxu0
    %v598 = vadd.f32 0.0, %v597
    %v599 = vpop.f32.mrb[0].mxu0
    %v600 = vpop.f32.mrb[0].mxu0
    %v601 = vadd.f32 0.0, %v600
    %v602 = vpop.f32.mrb[0].mxu0
    %603 = vmatprep.mubr.bf16.mxu0 0
    %604 = vmatmul.mubr.bf16.gmra.mrb[0].mxu0 %v528
    %v605 = vpop.f32.mrb[0].mxu0
    %v606 = vadd.f32 0.0, %v605
    %v607 = vpop.f32.mrb[0].mxu0
    %v608 = vpop.f32.mrb[0].mxu0
    %v609 = vadd.f32 0.0, %v608
    %v610 = vpop.f32.mrb[0].mxu0
    %611 = vmatprep.mubr.bf16.mxu0 0
    %612 = vmatmul.mubr.bf16.gmra.mrb[0].mxu0 %v531
    %v613 = vpop.f32.mrb[0].mxu0
    %v614 = vadd.f32 0.0, %v613
    %v615 = vpop.f32.mrb[0].mxu0
    %v616 = vpop.f32.mrb[0].mxu0
    %v617 = vadd.f32 0.0, %v616
    %v618 = vpop.f32.mrb[0].mxu0
    %619 = vmatprep.mubr.bf16.mxu0 0
    %620 = vmatmul.mubr.bf16.gmra.mrb[0].mxu0 %v534
    %v621 = vpop.f32.mrb[0].mxu0
    %v622 = vadd.f32 0.0, %v621
    %v623 = vpop.f32.mrb[0].mxu0
    %v624 = vpop.f32.mrb[0].mxu0
    %v625 = vadd.f32 0.0, %v624
    %v626 = vpop.f32.mrb[0].mxu0
    %627 = vmatprep.mubr.bf16.mxu0 0
    %628 = vmatmul.mubr.bf16.gmra.mrb[0].mxu0 %v537
    %v629 = vpop.f32.mrb[0].mxu0
    %v630 = vadd.f32 0.0, %v629
    %v631 = vpop.f32.mrb[0].mxu0
    %v632 = vpop.f32.mrb[0].mxu0
    %v633 = vadd.f32 0.0, %v632
    %v634 = vpop.f32.mrb[0].mxu0
    %635 = vdwg.mxu0
    %v636 = vadd.f32 %v371, %v574
    %v637 = vadd.f32 %v374, %v577
    %v638 = vadd.f32 %v379, %v582
    %v639 = vadd.f32 %v382, %v585
    %v640 = vadd.f32 %v387, %v590
    %v641 = vadd.f32 %v390, %v593
    %v642 = vadd.f32 %v395, %v598
    %v643 = vadd.f32 %v398, %v601
    %v644 = vadd.f32 %v403, %v606
    %v645 = vadd.f32 %v406, %v609
    %v646 = vadd.f32 %v411, %v614
    %v647 = vadd.f32 %v414, %v617
    %v648 = vadd.f32 %v419, %v622
    %v649 = vadd.f32 %v422, %v625
    %v650 = vadd.f32 %v427, %v630
    %v651 = vadd.f32 %v430, %v633
    %v652 = vld [vmem:[%s2] sm:$0x1]
    %v654 = vlaneseq
    %v655 = vshrl.u32 %v654, 7
    %v656 = vsub.s32 0, %v655
    %v657 = vrot.slane %v652, %v656
    %v659 = vadd.f32 %v636, %v657
    %v660 = vadd.f32 %v637, %v657
    %v661 = vadd.f32 %v638, %v657
    %v662 = vadd.f32 %v639, %v657
    %v663 = vadd.f32 %v640, %v657
    %v664 = vadd.f32 %v641, %v657
    %v665 = vadd.f32 %v642, %v657
    %v666 = vadd.f32 %v643, %v657
    %v667 = vadd.f32 %v644, %v657
    %v668 = vadd.f32 %v645, %v657
    %v669 = vadd.f32 %v646, %v657
    %v670 = vadd.f32 %v647, %v657
    %v671 = vadd.f32 %v648, %v657
    %v672 = vadd.f32 %v649, %v657
    %v673 = vadd.f32 %v650, %v657
    %v674 = vadd.f32 %v651, %v657
    %vm675 = vcmask 523264
    %v676 = vsel %vm675, %v659, -inf
    %v677 = vsel %vm675, %v660, -inf
    %v678 = vmax.f32 %v676, %v677
    %v679 = vrot.slane %v678, 4
    %v680 = vmax.f32 %v678, %v679
    %v681 = vrot.slane %v680, 2
    %v682 = vmax.f32 %v680, %v681
    %v683 = vrot.slane %v682, 1
    %v684 = vmax.f32 %v682, %v683
    %v685 = vsel %vm675, %v661, -inf
    %v686 = vsel %vm675, %v662, -inf
    %v687 = vmax.f32 %v685, %v686
    %v688 = vrot.slane %v687, 4
    %v689 = vmax.f32 %v687, %v688
    %v690 = vrot.slane %v689, 2
    %v691 = vmax.f32 %v689, %v690
    %v692 = vrot.slane %v691, 1
    %v693 = vmax.f32 %v691, %v692
    %v694 = vsel %vm675, %v663, -inf
    %v695 = vsel %vm675, %v664, -inf
    %v696 = vmax.f32 %v694, %v695
    %v697 = vrot.slane %v696, 4
    %v698 = vmax.f32 %v696, %v697
    %v699 = vrot.slane %v698, 2
    %v700 = vmax.f32 %v698, %v699
    %v701 = vrot.slane %v700, 1
    %v702 = vmax.f32 %v700, %v701
    %v703 = vsel %vm675, %v665, -inf
    %v704 = vsel %vm675, %v666, -inf
    %v705 = vmax.f32 %v703, %v704
    %v706 = vrot.slane %v705, 4
    %v707 = vmax.f32 %v705, %v706
    %v708 = vrot.slane %v707, 2
    %v709 = vmax.f32 %v707, %v708
    %v710 = vrot.slane %v709, 1
    %v711 = vmax.f32 %v709, %v710
    %v712 = vsel %vm675, %v667, -inf
    %v713 = vsel %vm675, %v668, -inf
    %v714 = vmax.f32 %v712, %v713
    %v715 = vrot.slane %v714, 4
    %v716 = vmax.f32 %v714, %v715
    %v717 = vrot.slane %v716, 2
    %v718 = vmax.f32 %v716, %v717
    %v719 = vrot.slane %v718, 1
    %v720 = vmax.f32 %v718, %v719
    %v721 = vsel %vm675, %v669, -inf
    %v722 = vsel %vm675, %v670, -inf
    %v723 = vmax.f32 %v721, %v722
    %v724 = vrot.slane %v723, 4
    %v725 = vmax.f32 %v723, %v724
    %v726 = vrot.slane %v725, 2
    %v727 = vmax.f32 %v725, %v726
    %v728 = vrot.slane %v727, 1
    %v729 = vmax.f32 %v727, %v728
    %v730 = vsel %vm675, %v671, -inf
    %v731 = vsel %vm675, %v672, -inf
    %v732 = vmax.f32 %v730, %v731
    %v733 = vrot.slane %v732, 4
    %v734 = vmax.f32 %v732, %v733
    %v735 = vrot.slane %v734, 2
    %v736 = vmax.f32 %v734, %v735
    %v737 = vrot.slane %v736, 1
    %v738 = vmax.f32 %v736, %v737
    %v739 = vsel %vm675, %v673, -inf
    %v740 = vsel %vm675, %v674, -inf
    %v741 = vmax.f32 %v739, %v740
    %v742 = vrot.slane %v741, 4
    %v743 = vmax.f32 %v741, %v742
    %v744 = vrot.slane %v743, 2
    %v745 = vmax.f32 %v743, %v744
    %v746 = vrot.slane %v745, 1
    %v747 = vmax.f32 %v745, %v746
    %v748 = vmax.f32 %v684, 0.0
    %v749 = vmax.f32 %v693, 0.0
    %v750 = vmax.f32 %v702, 0.0
    %v751 = vmax.f32 %v711, 0.0
    %v752 = vmax.f32 %v720, 0.0
    %v753 = vmax.f32 %v729, 0.0
    %v754 = vmax.f32 %v738, 0.0
    %v755 = vmax.f32 %v747, 0.0
    %v756 = vld [vmem:[%s3] sm:$0xf]
    %v757 = vld [vmem:[%s3 + $0x4] sm:$0x3]
    %v758 = vld [vmem:[%s5] sm:$0xf]
    %v761 = vunpack.c.l.b16 %v756
    %v762 = vunpack.c.l.b16 %v757
    %v763 = vpack.c.b16 %v762, %v761
    %vm764 = vcmask 97280
    %v766 = vsel %vm764, %v758, 0
    %vm768 = vcmask 1045504
    %v770 = vsel %vm768, %v763, 0
    %772 = vmatprep.subr.bf16.mxu0 0
    %773 = vmatpush1.bf16.msra.mxu0 %v770
    %774 = vmatprep.subr.bf16.mxu0 0
    %775 = vmatpush1.bf16.msra.mxu0 0
    %776 = vmatprep.subr.bf16.mxu0 0
    %777 = vmatpush1.bf16.msra.mxu0 0
    %778 = vmatprep.subr.bf16.mxu0 0
    %779 = vmatpush1.bf16.msra.mxu0 0
    %780 = vmatprep.subr.bf16.mxu0 0
    %781 = vmatpush1.bf16.msra.mxu0 0
    %782 = vmatprep.subr.bf16.mxu0 0
    %783 = vmatpush1.bf16.msra.mxu0 0
    %784 = vmatprep.subr.bf16.mxu0 0
    %785 = vmatpush1.bf16.msra.mxu0 0
    %786 = vmatprep.subr.bf16.mxu0 0
    %787 = vmatpush1.bf16.msra.mxu0 0
    %788 = vmatprep.subr.bf16.mxu0 0
    %789 = vmatpush1.bf16.msra.mxu0 0
    %790 = vmatprep.subr.bf16.mxu0 0
    %791 = vmatpush1.bf16.msra.mxu0 0
    %792 = vmatprep.subr.bf16.mxu0 0
    %793 = vmatpush1.bf16.msra.mxu0 0
    %794 = vmatprep.subr.bf16.mxu0 0
    %795 = vmatpush1.bf16.msra.mxu0 0
    %796 = vmatprep.subr.bf16.mxu0 0
    %797 = vmatpush1.bf16.msra.mxu0 0
    %798 = vmatprep.subr.bf16.mxu0 0
    %799 = vmatpush1.bf16.msra.mxu0 0
    %800 = vmatprep.subr.bf16.mxu0 0
    %801 = vmatpush1.bf16.msra.mxu0 0
    %802 = vmatprep.subr.bf16.mxu0 0
    %803 = vmatpush1.bf16.msra.mxu0 0
    %804 = vmatprep.mubr.bf16.mxu0 0
    %805 = vmatmul.mubr.bf16.gmra.mrb[0].mxu0 %v766
    %v806 = vpop.f32.mrb[0].mxu0
    %v807 = vadd.f32 0.0, %v806
    %v808 = vpop.f32.mrb[0].mxu0
    %v809 = vpop.f32.mrb[0].mxu0
    %v810 = vpop.f32.mrb[0].mxu0
    %811 = vdwg.mxu0
    %v813 = vrot.slane %v807, 1
    %v814 = vrot.slane %v807, 2
    %v815 = vrot.slane %v807, 3
    %v816 = vrot.slane %v807, 4
    %v817 = vrot.slane %v807, 5
    %v818 = vrot.slane %v807, 6
    %v819 = vrot.slane %v807, 7
    %v828 = vmul.f32 %v748, %v807
    %v829 = vmul.f32 %v749, %v813
    %v830 = vmul.f32 %v750, %v814
    %v831 = vmul.f32 %v751, %v815
    %v832 = vmul.f32 %v752, %v816
    %v833 = vmul.f32 %v753, %v817
    %v834 = vmul.f32 %v754, %v818
    %v835 = vmul.f32 %v755, %v819
    %v844 = vrot.slane %v829, 7
    %vm845 = vcmask 1041409
    %v846 = vsel %vm845, %v844, %v828
    %v847 = vrot.slane %v830, 6
    %vm848 = vcmask 1042434
    %v849 = vsel %vm848, %v847, %v846
    %v850 = vrot.slane %v831, 5
    %vm851 = vcmask 1043459
    %v852 = vsel %vm851, %v850, %v849
    %v853 = vrot.slane %v832, 4
    %vm854 = vcmask 1044484
    %v855 = vsel %vm854, %v853, %v852
    %v856 = vrot.slane %v833, 3
    %vm857 = vcmask 1045509
    %v858 = vsel %vm857, %v856, %v855
    %v859 = vrot.slane %v834, 2
    %vm860 = vcmask 1046534
    %v861 = vsel %vm860, %v859, %v858
    %v862 = vrot.slane %v835, 1
    %vm863 = vcmask 1047559
    %v864 = vsel %vm863, %v862, %v861
    %v866 = vsel %vm675, %v864, 0.0
    %867 = vadd.xlane.f32.xlu0 %v866
    %v868 = vpop.xlane.xlu0 %867
    %v871 = vunpack.c.l.s4 269488144
    %v872 = vunpack.c.0.s8 %v871
    %v873 = vlaneseq
    %v874 = vshrl.u32 %v873, 7
    %v875 = vsub.s32 %v872, %v874
    %v876 = vrot.slane %v868, %v875
    %v878 = vunpack.c.l.s4 842150450
    %v879 = vunpack.c.0.s8 %v878
    %v880 = vlaneseq
    %v881 = vshrl.u32 %v880, 7
    %v882 = vsub.s32 %v879, %v881
    %v883 = vrot.slane %v868, %v882
    %v885 = vunpack.c.l.s4 1414812756
    %v886 = vunpack.c.0.s8 %v885
    %v887 = vlaneseq
    %v888 = vshrl.u32 %v887, 7
    %v889 = vsub.s32 %v886, %v888
    %v890 = vrot.slane %v868, %v889
    %v892 = vunpack.c.l.s4 1987475062
    %v893 = vunpack.c.0.s8 %v892
    %v894 = vlaneseq
    %v895 = vshrl.u32 %v894, 7
    %v896 = vsub.s32 %v893, %v895
    %v897 = vrot.slane %v868, %v896
    %v903 = vunpack.c.l.s4 1983009808
    %v904 = vunpack.c.0.s8 %v903
    %v905 = vlaneseq
    %v906 = vshrl.u32 %v905, 7
    %v907 = vsub.s32 %v904, %v906
    %v908 = vrot.slane %v876, %v907
    %v910 = vunpack.c.l.s4 1983009808
    %v911 = vunpack.c.0.s8 %v910
    %v912 = vlaneseq
    %v913 = vshrl.u32 %v912, 7
    %v914 = vsub.s32 %v911, %v913
    %v915 = vrot.slane %v883, %v914
    %v917 = vunpack.c.l.s4 1983009808
    %v918 = vunpack.c.0.s8 %v917
    %v919 = vlaneseq
    %v920 = vshrl.u32 %v919, 7
    %v921 = vsub.s32 %v918, %v920
    %v922 = vrot.slane %v890, %v921
    %v924 = vunpack.c.l.s4 1983009808
    %v925 = vunpack.c.0.s8 %v924
    %v926 = vlaneseq
    %v927 = vshrl.u32 %v926, 7
    %v928 = vsub.s32 %v925, %v927
    %v929 = vrot.slane %v897, %v928
    %930 = vset.pattern.permute.xlu0 0
    %931 = vperm.xlu0 %930, %v908
    %v932 = vpop.permute.xlu0 %931
    %933 = vset.pattern.permute.xlu0 0
    %934 = vperm.xlu0 %933, %v915
    %v935 = vpop.permute.xlu0 %934
    %936 = vset.pattern.permute.xlu0 0
    %937 = vperm.xlu0 %936, %v922
    %v938 = vpop.permute.xlu0 %937
    %939 = vset.pattern.permute.xlu0 0
    %940 = vperm.xlu0 %939, %v929
    %v941 = vpop.permute.xlu0 %940
    %v942 = vlaneseq
    %v943 = vand.u32 %v942, 127
    %v944 = vlaneseq
    %v945 = vshrl.u32 %v944, 7
    %v946 = vsub.s32 %v943, %v945
    %v947 = vrot.slane %v932, %v946
    %v948 = vlaneseq
    %v949 = vshrl.u32 %v948, 7
    %v950 = vsub.s32 %v943, %v949
    %v951 = vrot.slane %v935, %v950
    %v952 = vlaneseq
    %v953 = vshrl.u32 %v952, 7
    %v954 = vsub.s32 %v943, %v953
    %v955 = vrot.slane %v938, %v954
    %v956 = vlaneseq
    %v957 = vshrl.u32 %v956, 7
    %v958 = vsub.s32 %v943, %v957
    %v959 = vrot.slane %v941, %v958
    %v960 = vsel %vm845, %v951, %v947
    %v961 = vsel %vm848, %v955, %v960
    %v962 = vsel %vm851, %v959, %v961
    %vm964 = vcmask 11264
    %v965 = vsel %vm964, %v962, -inf
    %966 = vmax.xlane.f32.xlu0 %v965
    %v967 = vpop.xlane.xlu0 %966
    %v970 = vunpack.c.l.s4 269488144
    %v971 = vunpack.c.0.s8 %v970
    %v972 = vlaneseq
    %v973 = vshrl.u32 %v972, 7
    %v974 = vsub.s32 %v971, %v973
    %v975 = vrot.slane %v967, %v974
    %v977 = vunpack.c.l.s4 842150450
    %v978 = vunpack.c.0.s8 %v977
    %v979 = vlaneseq
    %v980 = vshrl.u32 %v979, 7
    %v981 = vsub.s32 %v978, %v980
    %v982 = vrot.slane %v967, %v981
    %v983 = vcombine.low %v975, %v982
    %v985 = vunpack.c.l.s4 1983009808
    %v986 = vunpack.c.0.s8 %v985
    %v987 = vlaneseq
    %v988 = vshrl.u32 %v987, 7
    %v989 = vsub.s32 %v986, %v988
    %v990 = vrot.slane %v983, %v989
    %v991 = vlaneseq
    %v992 = vshrl.u32 %v991, 7
    %v993 = vsub.s32 0, %v992
    %v994 = vrot.slane %v990, %v993
    %996 = vbcast.lane.b32.xlu0 %v994, 256
    %v997 = vpop.permute.xlu0 %996
    %v998 = vlaneseq
    %v999 = vshrl.u32 %v998, 7
    %v1000 = vsub.s32 1, %v999
    %v1001 = vrot.slane %v990, %v1000
    %1003 = vbcast.lane.b32.xlu0 %v1001, 256
    %v1004 = vpop.permute.xlu0 %1003
    %v1005 = vlaneseq
    %v1006 = vshrl.u32 %v1005, 7
    %v1007 = vsub.s32 2, %v1006
    %v1008 = vrot.slane %v990, %v1007
    %1010 = vbcast.lane.b32.xlu0 %v1008, 256
    %v1011 = vpop.permute.xlu0 %1010
    %v1012 = vlaneseq
    %v1013 = vshrl.u32 %v1012, 7
    %v1014 = vsub.s32 3, %v1013
    %v1015 = vrot.slane %v990, %v1014
    %1017 = vbcast.lane.b32.xlu0 %v1015, 256
    %v1018 = vpop.permute.xlu0 %1017
    %v1020 = vunpack.c.l.s4 1983009808
    %v1021 = vunpack.c.0.s8 %v1020
    %v1022 = vlaneseq
    %v1023 = vshrl.u32 %v1022, 7
    %v1024 = vsub.s32 %v1021, %v1023
    %v1025 = vrot.slane %v997, %v1024
    %v1027 = vunpack.c.l.s4 1983009808
    %v1028 = vunpack.c.0.s8 %v1027
    %v1029 = vlaneseq
    %v1030 = vshrl.u32 %v1029, 7
    %v1031 = vsub.s32 %v1028, %v1030
    %v1032 = vrot.slane %v1004, %v1031
    %v1034 = vunpack.c.l.s4 1983009808
    %v1035 = vunpack.c.0.s8 %v1034
    %v1036 = vlaneseq
    %v1037 = vshrl.u32 %v1036, 7
    %v1038 = vsub.s32 %v1035, %v1037
    %v1039 = vrot.slane %v1011, %v1038
    %v1041 = vunpack.c.l.s4 1983009808
    %v1042 = vunpack.c.0.s8 %v1041
    %v1043 = vlaneseq
    %v1044 = vshrl.u32 %v1043, 7
    %v1045 = vsub.s32 %v1042, %v1044
    %v1046 = vrot.slane %v1018, %v1045
    %v1051 = vsub.f32 %v876, %v1025
    %v1052 = vsub.f32 %v883, %v1032
    %v1053 = vsub.f32 %v890, %v1039
    %v1054 = vsub.f32 %v897, %v1046
    %v1055 = vmul.f32 %v1051, 1.442695
    %v1056 = vpow.pop %v1055
    %v1057 = vmul.f32 %v1052, 1.442695
    %v1058 = vpow.pop %v1057
    %v1059 = vmul.f32 %v1053, 1.442695
    %v1060 = vpow.pop %v1059
    %v1061 = vmul.f32 %v1054, 1.442695
    %v1062 = vpow.pop %v1061
    %v1068 = vunpack.c.l.s4 1983009808
    %v1069 = vunpack.c.0.s8 %v1068
    %v1070 = vlaneseq
    %v1071 = vshrl.u32 %v1070, 7
    %v1072 = vsub.s32 %v1069, %v1071
    %v1073 = vrot.slane %v1056, %v1072
    %v1075 = vunpack.c.l.s4 1983009808
    %v1076 = vunpack.c.0.s8 %v1075
    %v1077 = vlaneseq
    %v1078 = vshrl.u32 %v1077, 7
    %v1079 = vsub.s32 %v1076, %v1078
    %v1080 = vrot.slane %v1058, %v1079
    %v1082 = vunpack.c.l.s4 1983009808
    %v1083 = vunpack.c.0.s8 %v1082
    %v1084 = vlaneseq
    %v1085 = vshrl.u32 %v1084, 7
    %v1086 = vsub.s32 %v1083, %v1085
    %v1087 = vrot.slane %v1060, %v1086
    %v1089 = vunpack.c.l.s4 1983009808
    %v1090 = vunpack.c.0.s8 %v1089
    %v1091 = vlaneseq
    %v1092 = vshrl.u32 %v1091, 7
    %v1093 = vsub.s32 %v1090, %v1092
    %v1094 = vrot.slane %v1062, %v1093
    %1095 = vset.pattern.permute.xlu0 0
    %1096 = vperm.xlu0 %1095, %v1073
    %v1097 = vpop.permute.xlu0 %1096
    %1098 = vset.pattern.permute.xlu0 0
    %1099 = vperm.xlu0 %1098, %v1080
    %v1100 = vpop.permute.xlu0 %1099
    %1101 = vset.pattern.permute.xlu0 0
    %1102 = vperm.xlu0 %1101, %v1087
    %v1103 = vpop.permute.xlu0 %1102
    %1104 = vset.pattern.permute.xlu0 0
    %1105 = vperm.xlu0 %1104, %v1094
    %v1106 = vpop.permute.xlu0 %1105
    %v1107 = vlaneseq
    %v1108 = vshrl.u32 %v1107, 7
    %v1109 = vsub.s32 %v943, %v1108
    %v1110 = vrot.slane %v1097, %v1109
    %v1111 = vlaneseq
    %v1112 = vshrl.u32 %v1111, 7
    %v1113 = vsub.s32 %v943, %v1112
    %v1114 = vrot.slane %v1100, %v1113
    %v1115 = vlaneseq
    %v1116 = vshrl.u32 %v1115, 7
    %v1117 = vsub.s32 %v943, %v1116
    %v1118 = vrot.slane %v1103, %v1117
    %v1119 = vlaneseq
    %v1120 = vshrl.u32 %v1119, 7
    %v1121 = vsub.s32 %v943, %v1120
    %v1122 = vrot.slane %v1106, %v1121
    %v1123 = vsel %vm845, %v1114, %v1110
    %v1124 = vsel %vm848, %v1118, %v1123
    %v1125 = vsel %vm851, %v1122, %v1124
    %v1127 = vsel %vm964, %v1125, 0.0
    %1128 = vadd.xlane.f32.xlu0 %v1127
    %v1129 = vpop.xlane.xlu0 %1128
    %v1132 = vunpack.c.l.s4 269488144
    %v1133 = vunpack.c.0.s8 %v1132
    %v1134 = vlaneseq
    %v1135 = vshrl.u32 %v1134, 7
    %v1136 = vsub.s32 %v1133, %v1135
    %v1137 = vrot.slane %v1129, %v1136
    %v1139 = vunpack.c.l.s4 842150450
    %v1140 = vunpack.c.0.s8 %v1139
    %v1141 = vlaneseq
    %v1142 = vshrl.u32 %v1141, 7
    %v1143 = vsub.s32 %v1140, %v1142
    %v1144 = vrot.slane %v1129, %v1143
    %v1145 = vcombine.low %v1137, %v1144
    %v1147 = vunpack.c.l.s4 1983009808
    %v1148 = vunpack.c.0.s8 %v1147
    %v1149 = vlaneseq
    %v1150 = vshrl.u32 %v1149, 7
    %v1151 = vsub.s32 %v1148, %v1150
    %v1152 = vrot.slane %v1145, %v1151
    %v1153 = vlaneseq
    %v1154 = vshrl.u32 %v1153, 7
    %v1155 = vsub.s32 0, %v1154
    %v1156 = vrot.slane %v1152, %v1155
    %1158 = vbcast.lane.b32.xlu0 %v1156, 256
    %v1159 = vpop.permute.xlu0 %1158
    %v1160 = vlaneseq
    %v1161 = vshrl.u32 %v1160, 7
    %v1162 = vsub.s32 1, %v1161
    %v1163 = vrot.slane %v1152, %v1162
    %1165 = vbcast.lane.b32.xlu0 %v1163, 256
    %v1166 = vpop.permute.xlu0 %1165
    %v1167 = vlaneseq
    %v1168 = vshrl.u32 %v1167, 7
    %v1169 = vsub.s32 2, %v1168
    %v1170 = vrot.slane %v1152, %v1169
    %1172 = vbcast.lane.b32.xlu0 %v1170, 256
    %v1173 = vpop.permute.xlu0 %1172
    %v1174 = vlaneseq
    %v1175 = vshrl.u32 %v1174, 7
    %v1176 = vsub.s32 3, %v1175
    %v1177 = vrot.slane %v1152, %v1176
    %1179 = vbcast.lane.b32.xlu0 %v1177, 256
    %v1180 = vpop.permute.xlu0 %1179
    %v1182 = vunpack.c.l.s4 1983009808
    %v1183 = vunpack.c.0.s8 %v1182
    %v1184 = vlaneseq
    %v1185 = vshrl.u32 %v1184, 7
    %v1186 = vsub.s32 %v1183, %v1185
    %v1187 = vrot.slane %v1159, %v1186
    %v1189 = vunpack.c.l.s4 1983009808
    %v1190 = vunpack.c.0.s8 %v1189
    %v1191 = vlaneseq
    %v1192 = vshrl.u32 %v1191, 7
    %v1193 = vsub.s32 %v1190, %v1192
    %v1194 = vrot.slane %v1166, %v1193
    %v1196 = vunpack.c.l.s4 1983009808
    %v1197 = vunpack.c.0.s8 %v1196
    %v1198 = vlaneseq
    %v1199 = vshrl.u32 %v1198, 7
    %v1200 = vsub.s32 %v1197, %v1199
    %v1201 = vrot.slane %v1173, %v1200
    %v1203 = vunpack.c.l.s4 1983009808
    %v1204 = vunpack.c.0.s8 %v1203
    %v1205 = vlaneseq
    %v1206 = vshrl.u32 %v1205, 7
    %v1207 = vsub.s32 %v1204, %v1206
    %v1208 = vrot.slane %v1180, %v1207
    %v1213 = vrcp.pop %v1187
    %v1214 = vmul.f32 %v1056, %v1213
    %v1215 = vrcp.pop %v1194
    %v1216 = vmul.f32 %v1058, %v1215
    %v1217 = vrcp.pop %v1201
    %v1218 = vmul.f32 %v1060, %v1217
    %v1219 = vrcp.pop %v1208
    %v1220 = vmul.f32 %v1062, %v1219
    %1222 = vset.pattern.permute.xlu0 0
    %1223 = vperm.xlu0 %1222, %v1214
    %v1224 = vpop.permute.xlu0 %1223
    %v1227 = vunpack.c.l.s4 269488144
    %v1228 = vunpack.c.0.s8 %v1227
    %v1229 = vlaneseq
    %v1230 = vshrl.u32 %v1229, 7
    %v1231 = vsub.s32 %v1228, %v1230
    %v1232 = vrot.slane %v1224, %v1231
    %1234 = vset.pattern.permute.xlu0 0
    %1235 = vperm.xlu0 %1234, %v1216
    %v1236 = vpop.permute.xlu0 %1235
    %v1239 = vunpack.c.l.s4 269488144
    %v1240 = vunpack.c.0.s8 %v1239
    %v1241 = vlaneseq
    %v1242 = vshrl.u32 %v1241, 7
    %v1243 = vsub.s32 %v1240, %v1242
    %v1244 = vrot.slane %v1236, %v1243
    %1246 = vset.pattern.permute.xlu0 0
    %1247 = vperm.xlu0 %1246, %v1218
    %v1248 = vpop.permute.xlu0 %1247
    %v1251 = vunpack.c.l.s4 269488144
    %v1252 = vunpack.c.0.s8 %v1251
    %v1253 = vlaneseq
    %v1254 = vshrl.u32 %v1253, 7
    %v1255 = vsub.s32 %v1252, %v1254
    %v1256 = vrot.slane %v1248, %v1255
    %1258 = vset.pattern.permute.xlu0 0
    %1259 = vperm.xlu0 %1258, %v1220
    %v1260 = vpop.permute.xlu0 %1259
    %v1263 = vunpack.c.l.s4 269488144
    %v1264 = vunpack.c.0.s8 %v1263
    %v1265 = vlaneseq
    %v1266 = vshrl.u32 %v1265, 7
    %v1267 = vsub.s32 %v1264, %v1266
    %v1268 = vrot.slane %v1260, %v1267
    %v1278 = vunpack.c.l.s4 1983009808
    %v1279 = vunpack.c.0.s8 %v1278
    %v1280 = vlaneseq
    %v1281 = vshrl.u32 %v1280, 7
    %v1282 = vsub.s32 %v1279, %v1281
    %v1283 = vrot.slane %v748, %v1282
    %v1285 = vunpack.c.l.s4 1983009808
    %v1286 = vunpack.c.0.s8 %v1285
    %v1287 = vlaneseq
    %v1288 = vshrl.u32 %v1287, 7
    %v1289 = vsub.s32 %v1286, %v1288
    %v1290 = vrot.slane %v749, %v1289
    %v1292 = vunpack.c.l.s4 1983009808
    %v1293 = vunpack.c.0.s8 %v1292
    %v1294 = vlaneseq
    %v1295 = vshrl.u32 %v1294, 7
    %v1296 = vsub.s32 %v1293, %v1295
    %v1297 = vrot.slane %v750, %v1296
    %v1299 = vunpack.c.l.s4 1983009808
    %v1300 = vunpack.c.0.s8 %v1299
    %v1301 = vlaneseq
    %v1302 = vshrl.u32 %v1301, 7
    %v1303 = vsub.s32 %v1300, %v1302
    %v1304 = vrot.slane %v751, %v1303
    %v1306 = vunpack.c.l.s4 1983009808
    %v1307 = vunpack.c.0.s8 %v1306
    %v1308 = vlaneseq
    %v1309 = vshrl.u32 %v1308, 7
    %v1310 = vsub.s32 %v1307, %v1309
    %v1311 = vrot.slane %v752, %v1310
    %v1313 = vunpack.c.l.s4 1983009808
    %v1314 = vunpack.c.0.s8 %v1313
    %v1315 = vlaneseq
    %v1316 = vshrl.u32 %v1315, 7
    %v1317 = vsub.s32 %v1314, %v1316
    %v1318 = vrot.slane %v753, %v1317
    %v1320 = vunpack.c.l.s4 1983009808
    %v1321 = vunpack.c.0.s8 %v1320
    %v1322 = vlaneseq
    %v1323 = vshrl.u32 %v1322, 7
    %v1324 = vsub.s32 %v1321, %v1323
    %v1325 = vrot.slane %v754, %v1324
    %v1327 = vunpack.c.l.s4 1983009808
    %v1328 = vunpack.c.0.s8 %v1327
    %v1329 = vlaneseq
    %v1330 = vshrl.u32 %v1329, 7
    %v1331 = vsub.s32 %v1328, %v1330
    %v1332 = vrot.slane %v755, %v1331
    %v1333 = vsel %vm854, %v1283, %v1283
    %v1334 = vsel %vm860, %v1283, %v1333
    %v1335 = vrot.slane %v1290, 7
    %v1336 = vsel %vm845, %v1335, %v1334
    %v1337 = vsel %vm851, %v1335, %v1336
    %v1338 = vsel %vm857, %v1335, %v1337
    %v1339 = vsel %vm863, %v1335, %v1338
    %v1340 = vsel %vm854, %v1297, %v1297
    %v1341 = vsel %vm860, %v1297, %v1340
    %v1342 = vrot.slane %v1304, 7
    %v1343 = vsel %vm845, %v1342, %v1341
    %v1344 = vsel %vm851, %v1342, %v1343
    %v1345 = vsel %vm857, %v1342, %v1344
    %v1346 = vsel %vm863, %v1342, %v1345
    %v1347 = vsel %vm854, %v1311, %v1311
    %v1348 = vsel %vm860, %v1311, %v1347
    %v1349 = vrot.slane %v1318, 7
    %v1350 = vsel %vm845, %v1349, %v1348
    %v1351 = vsel %vm851, %v1349, %v1350
    %v1352 = vsel %vm857, %v1349, %v1351
    %v1353 = vsel %vm863, %v1349, %v1352
    %v1354 = vsel %vm854, %v1325, %v1325
    %v1355 = vsel %vm860, %v1325, %v1354
    %v1356 = vrot.slane %v1332, 7
    %v1357 = vsel %vm845, %v1356, %v1355
    %v1358 = vsel %vm851, %v1356, %v1357
    %v1359 = vsel %vm857, %v1356, %v1358
    %v1360 = vsel %vm863, %v1356, %v1359
    %v1365 = vmul.f32 %v1232, %v1339
    %v1366 = vmul.f32 %v1244, %v1346
    %v1367 = vmul.f32 %v1256, %v1353
    %v1368 = vmul.f32 %v1268, %v1360
    %vm1369 = vcmask 517120
    %v1370 = vsel %vm1369, %v1365, 0.0
    %v1371 = vrot.slane %v1370, 4
    %v1372 = vadd.f32 %v1370, %v1371
    %v1373 = vrot.slane %v1372, 2
    %v1374 = vadd.f32 %v1372, %v1373
    %v1375 = vrot.slane %v1374, 1
    %v1376 = vadd.f32 %v1374, %v1375
    %v1377 = vsel %vm1369, %v1366, 0.0
    %v1378 = vrot.slane %v1377, 4
    %v1379 = vadd.f32 %v1377, %v1378
    %v1380 = vrot.slane %v1379, 2
    %v1381 = vadd.f32 %v1379, %v1380
    %v1382 = vrot.slane %v1381, 1
    %v1383 = vadd.f32 %v1381, %v1382
    %v1384 = vsel %vm1369, %v1367, 0.0
    %v1385 = vrot.slane %v1384, 4
    %v1386 = vadd.f32 %v1384, %v1385
    %v1387 = vrot.slane %v1386, 2
    %v1388 = vadd.f32 %v1386, %v1387
    %v1389 = vrot.slane %v1388, 1
    %v1390 = vadd.f32 %v1388, %v1389
    %v1391 = vsel %vm1369, %v1368, 0.0
    %v1392 = vrot.slane %v1391, 4
    %v1393 = vadd.f32 %v1391, %v1392
    %v1394 = vrot.slane %v1393, 2
    %v1395 = vadd.f32 %v1393, %v1394
    %v1396 = vrot.slane %v1395, 1
    %v1397 = vadd.f32 %v1395, %v1396
    %v1398 = vpack.c.bf16 %v1376, %v1376
    %v1399 = vpack.c.bf16 %v1383, %v1383
    %v1400 = vpack.c.bf16 %v1390, %v1390
    %v1401 = vpack.c.bf16 %v1397, %v1397
    %v1402 = vld [vmem:[%s4] sm:$0x1]
    %v1404 = vlaneseq
    %v1405 = vshrl.u32 %v1404, 7
    %v1406 = vsub.s32 0, %v1405
    %v1407 = vrot.slane %v1402, %v1406
    %v1413 = vunpack.c.l.b16 %v1398
    %v1414 = vunpack.c.l.b16 %v1399
    %v1415 = vunpack.c.l.b16 %v1400
    %v1416 = vunpack.c.l.b16 %v1401
    %v1417 = vsel %vm845, %v1414, %v1413
    %v1418 = vsel %vm848, %v1415, %v1417
    %v1419 = vsel %vm851, %v1416, %v1418
    %v1420 = vpack.c.b16 %v1419, %v1419
    %v1422 = vsel %vm675, %v1420, 0
    %v1424 = vsel %vm675, %v763, 0
    %1426 = vmatprep.subr.bf16.mxu0 0
    %1427 = vmatpush1.bf16.xpose.msra.mxu0 %v1424
    %1428 = vmatprep.subr.bf16.mxu0 0
    %1429 = vmatpush1.bf16.xpose.msra.mxu0 0
    %1430 = vmatprep.subr.bf16.mxu0 0
    %1431 = vmatpush1.bf16.xpose.msra.mxu0 0
    %1432 = vmatprep.subr.bf16.mxu0 0
    %1433 = vmatpush1.bf16.xpose.msra.mxu0 0
    %1434 = vmatprep.subr.bf16.mxu0 0
    %1435 = vmatpush1.bf16.xpose.msra.mxu0 0
    %1436 = vmatprep.subr.bf16.mxu0 0
    %1437 = vmatpush1.bf16.xpose.msra.mxu0 0
    %1438 = vmatprep.subr.bf16.mxu0 0
    %1439 = vmatpush1.bf16.xpose.msra.mxu0 0
    %1440 = vmatprep.subr.bf16.mxu0 0
    %1441 = vmatpush1.bf16.xpose.msra.mxu0 0
    %1442 = vmatprep.subr.bf16.mxu0 0
    %1443 = vmatpush1.bf16.xpose.msra.mxu0 0
    %1444 = vmatprep.subr.bf16.mxu0 0
    %1445 = vmatpush1.bf16.xpose.msra.mxu0 0
    %1446 = vmatprep.subr.bf16.mxu0 0
    %1447 = vmatpush1.bf16.xpose.msra.mxu0 0
    %1448 = vmatprep.subr.bf16.mxu0 0
    %1449 = vmatpush1.bf16.xpose.msra.mxu0 0
    %1450 = vmatprep.subr.bf16.mxu0 0
    %1451 = vmatpush1.bf16.xpose.msra.mxu0 0
    %1452 = vmatprep.subr.bf16.mxu0 0
    %1453 = vmatpush1.bf16.xpose.msra.mxu0 0
    %1454 = vmatprep.subr.bf16.mxu0 0
    %1455 = vmatpush1.bf16.xpose.msra.mxu0 0
    %1456 = vmatprep.subr.bf16.mxu0 0
    %1457 = vmatpush1.bf16.xpose.msra.mxu0 0
    %1458 = vmatprep.mubr.bf16.mxu0 0
    %1459 = vmatmul.mubr.bf16.gmra.mrb[0].mxu0 %v1422
    %v1460 = vpop.f32.mrb[0].mxu0
    %v1461 = vadd.f32 %v1407, %v1460
    %v1462 = vpop.f32.mrb[0].mxu0
    %v1463 = vpop.f32.mrb[0].mxu0
    %v1464 = vpop.f32.mrb[0].mxu0
    %1465 = vdwg.mxu0
    %vm1466 = vcmask 93184
    %v1467 = vsel %vm1466, %v1461, -inf
    %1468 = vmax.xlane.f32.xlu0 %v1467
    %v1469 = vpop.xlane.xlu0 %1468
    %v1470 = vsub.f32 %v1461, %v1469
    %v1471 = vmul.f32 %v1470, 1.442695
    %v1472 = vpow.pop %v1471
    %v1473 = vsel %vm1466, %v1472, 0.0
    %1474 = vadd.xlane.f32.xlu0 %v1473
    %v1475 = vpop.xlane.xlu0 %1474
    %v1476 = vlog2.pop %v1475
    %v1477 = vmul.f32 %v1476, 0.6931472
    %v1478 = vadd.f32 %v1469, %v1477
    %v1479 = vsub.f32 %v1461, %v1478
    %v1480 = vld [vmem:[%s6] sm:$0xf]
    %v1481 = vmul.f32 %v1480, %v1479
    %v1482 = vsel %vm1466, %v1481, 0.0
    %1483 = vadd.xlane.f32.xlu0 %v1482
    %v1484 = vpop.xlane.xlu0 %1483
    %v1485 = vsub.f32 0.0, %v1484
    %vm1486 = vcmask 1043456
    %v1487 = vsel %vm1486, %v1485, 0.0
    %v1488 = vrot.slane %v1487, 4
    %v1489 = vadd.f32 %v1487, %v1488
    %v1490 = vrot.slane %v1489, 2
    %v1491 = vadd.f32 %v1489, %v1490
    %v1492 = vrot.slane %v1491, 1
    %v1493 = vadd.f32 %v1491, %v1492
    %v1494 = vrcp.pop 4.0
    %v1495 = vmul.f32 %v1493, %v1494
    %vm1496 = vcmask 0
    %1497 = vst.msk [vmem:[#allocation2] sm:$0x1] %vm1496, %v1495
    // Predicated region
    $region30: #{tpu_custom_call.1} parent=1 // pred_check
      _
    $region31: #{tpu_custom_call.1} parent=1 // pred_check_branch
      %1499 = sbr.rel (0) target = $region33
    $region32: #{tpu_custom_call.1} parent=1 // pred_region
      %s1501 = ssub.s32 16, 16
      %1502 = vsyncadd [#allocation3], %s1501
      %s1504 = sshll.u32 [#allocation2], 4
      %s1505 = int_to_ptr.vmem [resolvable:$true] %s1504
      %1507 = dma.vmem_to_hbm [thread:$0]  %s1505, 16, %s7, [#allocation3]
    $region33: #{tpu_custom_call.1} parent=1 // pred_fallthru
      _
    // Predicated region
    $region34: #{tpu_custom_call.1} parent=1 // pred_check
      _
    $region35: #{tpu_custom_call.1} parent=1 // pred_check_branch
      %1509 = sbr.rel (0) target = $region37
    $region36: #{tpu_custom_call.1} parent=1 // pred_region
      %1510 = dma.done [#allocation3], 16
    $region37: #{tpu_custom_call.1} parent=1 // pred_fallthru
      _
    %1511 = vsyncpa [#allocation3], 1

</llo_original>
